<compile_context>
chip_gen: v7x
topology: tpu7x:2x2x1
jax: 0.10.0
libtpu: 0.0.40
codegen_flags: <defaults>
</compile_context>

<pallas_src>
import functools

import numpy as np
import jax
import jax.numpy as jnp
from jax.experimental import pallas as pl
from jax.experimental.pallas import tpu as pltpu

LRELU_SLOPE = 0.2
IN_EPS = 1e-5
ACT_DTYPE = jnp.bfloat16
VMEM_LIMIT = 48 * 1024 * 1024   # > default 32 MiB, <= v7x physical 64 MiB


def _round_up(x, m):
    return (x + m - 1) // m * m


def _lp(H, W):
    return _round_up((H + 2) * (W + 2), 128)


def _compiler_params():
    return pltpu.CompilerParams(dimension_semantics=("parallel",),
                                vmem_limit_bytes=VMEM_LIMIT)


# ----------------------------------------------------------------------------
# Padded-flat layout helpers (cheap XLA glue)
# ----------------------------------------------------------------------------
def _interior_mask(H, W, Lp):
    """(1, Lp) f32 mask, 1.0 at valid interior pixels of the padded-flat layout."""
    Wp = W + 2
    idx = jax.lax.broadcasted_iota(jnp.int32, (1, Lp), 1)
    hq = idx // Wp
    wq = idx % Wp
    valid = (hq >= 1) & (hq <= H) & (wq >= 1) & (wq <= W)
    return valid.astype(jnp.float32)


def _pad_to_pf(img):
    """(N, C, H, W) -> padded-flat (N, C, Lp) with zero border / tail."""
    N, C, H, W = img.shape
    Lp = _lp(H, W)
    hw_pad = (H + 2) * (W + 2)
    xp = jnp.pad(img, ((0, 0), (0, 0), (1, 1), (1, 1)))
    xf = xp.reshape(N, C, hw_pad)
    return jnp.pad(xf, ((0, 0), (0, 0), (0, Lp - hw_pad)))


def _crop_from_pf(x_pf, H, W):
    """padded-flat (N, C, Lp) -> compact (N, C, H*W)."""
    N, C, _ = x_pf.shape
    Hp, Wp = H + 2, W + 2
    x = x_pf[:, :, :Hp * Wp].reshape(N, C, Hp, Wp)
    return x[:, :, 1:H + 1, 1:W + 1].reshape(N, C, H * W)


# ----------------------------------------------------------------------------
# fc layer: Linear + LeakyReLU
# ----------------------------------------------------------------------------
def _fc_kernel(x_ref, w_ref, b_ref, o_ref):
    acc = jnp.dot(x_ref[...].astype(jnp.bfloat16),
                  w_ref[...].astype(jnp.bfloat16),
                  preferred_element_type=jnp.float32)
    acc = acc + b_ref[...]
    acc = jnp.where(acc >= 0.0, acc, LRELU_SLOPE * acc)
    o_ref[...] = acc.astype(o_ref.dtype)


@functools.partial(jax.jit, static_argnames=("c8",))
def fc_layer(x, w, b, *, c8):
    """Linear(512 -> c8*16) + LeakyReLU, returned as padded-flat (N, c8, Lp(4,4))."""
    N, K = x.shape
    F = w.shape[1]
    out = pl.pallas_call(
        _fc_kernel,
        out_shape=jax.ShapeDtypeStruct((N, F), ACT_DTYPE),
        grid=(1,),
        in_specs=[
            pl.BlockSpec((N, K), lambda i: (0, 0)),
            pl.BlockSpec((K, F), lambda i: (0, 0)),
            pl.BlockSpec((1, F), lambda i: (0, 0)),
        ],
        out_specs=pl.BlockSpec((N, F), lambda i: (0, 0)),
        compiler_params=_compiler_params(),
    )(x, w, b.reshape(1, F))
    img = out.reshape(N, c8, 4, 4)
    return _pad_to_pf(img)


# ----------------------------------------------------------------------------
# Fused 3x3 conv + InstanceNorm/AdaIN + LeakyReLU (+ residual)
# ----------------------------------------------------------------------------
def _make_conv_kernel(offsets, Lp, hw, has_res):
    inv_hw = 1.0 / float(hw)
    shifts = tuple(int((-off) % Lp) for off in offsets)

    def kernel(x_ref, w_ref, b_ref, g_ref, be_ref, m_ref, *rest):
        o_ref = rest[-1]
        x = x_ref[0].astype(jnp.float32)              # (Ci, Lp), f32 for rolls
        m = m_ref[...]                                # (1, Lp)
        acc = None
        for t, s in enumerate(shifts):
            xt = x if s == 0 else pltpu.roll(x, s, 1)
            part = jnp.dot(w_ref[t].astype(jnp.bfloat16),
                           xt.astype(jnp.bfloat16),
                           preferred_element_type=jnp.float32)
            acc = part if acc is None else acc + part
        acc = acc + b_ref[...]                        # (Co, 1) broadcast
        # masked per-channel statistics over the H*W valid pixels (f32)
        mean = jnp.sum(acc * m, axis=1, keepdims=True) * inv_hw
        cen = acc - mean
        var = jnp.sum(cen * cen * m, axis=1, keepdims=True) * inv_hw
        y = cen * jax.lax.rsqrt(var + IN_EPS)
        y = y * g_ref[0] + be_ref[0]
        y = jnp.where(y >= 0.0, y, LRELU_SLOPE * y)
        y = y * m                                     # zero padded border / tail
        if has_res:
            y = y + rest[0][0].astype(jnp.float32)
        o_ref[0] = y.astype(o_ref.dtype)

    return kernel


@functools.partial(jax.jit, static_argnames=("H", "W"))
def conv_block_pf(x_pf, w, b, gamma, beta, residual, *, H, W):
    """Conv2d(3,1,1) + InstanceNorm/AdaIN + LeakyReLU (+ residual), PF -> PF."""
    N, Ci, Lp = x_pf.shape
    Co = w.shape[0]
    Wp = W + 2
    w9 = jnp.transpose(w, (2, 3, 0, 1)).reshape(9, Co, Ci)   # (tap, Co, Ci)
    offsets = tuple((ky - 1) * Wp + (kx - 1) for ky in range(3) for kx in range(3))
    mask = _interior_mask(H, W, Lp)

    in_specs = [
        pl.BlockSpec((1, Ci, Lp), lambda n: (n, 0, 0)),
        pl.BlockSpec((9, Co, Ci), lambda n: (0, 0, 0)),
        pl.BlockSpec((Co, 1), lambda n: (0, 0)),
        pl.BlockSpec((1, Co, 1), lambda n: (n, 0, 0)),
        pl.BlockSpec((1, Co, 1), lambda n: (n, 0, 0)),
        pl.BlockSpec((1, Lp), lambda n: (0, 0)),
    ]
    args = [x_pf, w9, b.reshape(Co, 1),
            gamma.reshape(N, Co, 1), beta.reshape(N, Co, 1), mask]
    if residual is not None:
        in_specs.append(pl.BlockSpec((1, Co, Lp), lambda n: (n, 0, 0)))
        args.append(residual)

    kernel = _make_conv_kernel(offsets, Lp, H * W, residual is not None)
    return pl.pallas_call(
        kernel,
        out_shape=jax.ShapeDtypeStruct((N, Co, Lp), ACT_DTYPE),
        grid=(N,),
        in_specs=in_specs,
        out_specs=pl.BlockSpec((1, Co, Lp), lambda n: (n, 0, 0)),
        compiler_params=_compiler_params(),
    )(*args)


# ----------------------------------------------------------------------------
# Fused ConvTranspose2d(2,2,0) + InstanceNorm/AdaIN + LeakyReLU
# ----------------------------------------------------------------------------
def _make_deconv_kernel(hw):
    inv = 1.0 / (4.0 * float(hw))

    def kernel(x_ref, w_ref, b_ref, g_ref, be_ref, o_ref):
        x = x_ref[0]                                   # (Ci, HW) bf16
        ys = []
        for p in range(4):
            y = jnp.dot(w_ref[p].astype(jnp.bfloat16), x,
                        preferred_element_type=jnp.float32)
            ys.append(y + b_ref[...])
        mean = (jnp.sum(ys[0], axis=1, keepdims=True)
                + jnp.sum(ys[1], axis=1, keepdims=True)
                + jnp.sum(ys[2], axis=1, keepdims=True)
                + jnp.sum(ys[3], axis=1, keepdims=True)) * inv
        var = (jnp.sum((ys[0] - mean) ** 2, axis=1, keepdims=True)
               + jnp.sum((ys[1] - mean) ** 2, axis=1, keepdims=True)
               + jnp.sum((ys[2] - mean) ** 2, axis=1, keepdims=True)
               + jnp.sum((ys[3] - mean) ** 2, axis=1, keepdims=True)) * inv
        scale = jax.lax.rsqrt(var + IN_EPS) * g_ref[0]
        shift = be_ref[0] - mean * scale
        for p in range(4):
            yp = ys[p] * scale + shift
            yp = jnp.where(yp >= 0.0, yp, LRELU_SLOPE * yp)
            o_ref[0, p] = yp.astype(o_ref.dtype)

    return kernel


@functools.partial(jax.jit, static_argnames=("H", "W"))
def deconv_block_pf(x_pf, w, b, gamma, beta, *, H, W):
    """ConvTranspose2d(2,2,0) + InstanceNorm/AdaIN + LeakyReLU, PF -> PF(2H,2W)."""
    N = x_pf.shape[0]
    Ci, Co = w.shape[0], w.shape[1]
    HW = H * W
    x = _crop_from_pf(x_pf, H, W)                      # (N, Ci, H*W)
    w4 = jnp.transpose(w, (2, 3, 1, 0)).reshape(4, Co, Ci)   # (phase, Co, Ci)

    kernel = _make_deconv_kernel(HW)
    y4 = pl.pallas_call(
        kernel,
        out_shape=jax.ShapeDtypeStruct((N, 4, Co, HW), ACT_DTYPE),
        grid=(N,),
        in_specs=[
            pl.BlockSpec((1, Ci, HW), lambda n: (n, 0, 0)),
            pl.BlockSpec((4, Co, Ci), lambda n: (0, 0, 0)),
            pl.BlockSpec((Co, 1), lambda n: (0, 0)),
            pl.BlockSpec((1, Co, 1), lambda n: (n, 0, 0)),
            pl.BlockSpec((1, Co, 1), lambda n: (n, 0, 0)),
        ],
        out_specs=pl.BlockSpec((1, 4, Co, HW), lambda n: (n, 0, 0, 0)),
        compiler_params=_compiler_params(),
    )(x, w4, b.reshape(Co, 1), gamma.reshape(N, Co, 1), beta.reshape(N, Co, 1))

    # sub-pixel phase interleave (cheap XLA reorder) + re-pad for the next conv
    img = y4.reshape(N, 2, 2, Co, H, W)
    img = jnp.transpose(img, (0, 3, 4, 1, 5, 2)).reshape(N, Co, 2 * H, 2 * W)
    return _pad_to_pf(img)


# ----------------------------------------------------------------------------
# Output 1x1 conv + sigmoid
# ----------------------------------------------------------------------------
def _out_kernel(x_ref, w_ref, b_ref, o_ref):
    y = jnp.dot(w_ref[...].astype(jnp.bfloat16), x_ref[0],
                preferred_element_type=jnp.float32)
    y = y + b_ref[...]
    o_ref[0] = jax.nn.sigmoid(y)


@functools.partial(jax.jit, static_argnames=("H", "W"))
def output_layer_pf(x_pf, w, b, *, H, W):
    """1x1 conv + sigmoid on the padded-flat carry -> (N, out_dim, H, W) f32."""
    N, C, Lp = x_pf.shape
    O = w.shape[0]
    y = pl.pallas_call(
        _out_kernel,
        out_shape=jax.ShapeDtypeStruct((N, O, Lp), jnp.float32),
        grid=(N,),
        in_specs=[
            pl.BlockSpec((1, C, Lp), lambda n: (n, 0, 0)),
            pl.BlockSpec((O, C), lambda n: (0, 0)),
            pl.BlockSpec((O, 1), lambda n: (0, 0)),
        ],
        out_specs=pl.BlockSpec((1, O, Lp), lambda n: (n, 0, 0)),
        compiler_params=_compiler_params(),
    )(x_pf, w, b.reshape(O, 1))
    Hp, Wp = H + 2, W + 2
    return y[:, :, :Hp * Wp].reshape(N, O, Hp, Wp)[:, :, 1:H + 1, 1:W + 1]


# ----------------------------------------------------------------------------
# Parameters (deterministic synthetic init)
# ----------------------------------------------------------------------------
def _chain_cfg(ndf):
    c8, c4, c2, c1 = 8 * ndf, 4 * ndf, 2 * ndf, ndf
    return [
        ("deconv", c8, c8, "in"),    # 4  -> 8
        ("res",    c8, c8, "in"),
        ("deconv", c8, c8, "in"),    # 8  -> 16
        ("res",    c8, c8, "in"),
        ("deconv", c8, c4, "in"),    # 16 -> 32
        ("res",    c4, c4, "in"),
        ("deconv", c4, c4, "in"),    # 32 -> 64
        ("res",    c4, c4, "in"),
        ("deconv", c4, c2, "in"),    # 64 -> 128
        ("res",    c2, c2, "in"),
        ("deconv", c2, c1, "adain"), # 128 -> 256
        ("res",    c1, c1, "adain"),
        ("conv",   c1, c1, "adain"),
        ("res",    c1, c1, "adain"),
        ("conv",   c1, c1, "adain"),
    ]


def init_decoder_params(key, batch, ndf=8, output_dim=3):
    keys = iter(jax.random.split(key, 256))

    def nxt():
        return next(keys)

    def conv_p(cin, cout, k):
        w = jax.random.normal(nxt(), (cout, cin, k, k), jnp.float32) / np.sqrt(cin * k * k)
        b = 0.01 * jax.random.normal(nxt(), (cout,), jnp.float32)
        return w, b

    def deconv_p(cin, cout):
        w = jax.random.normal(nxt(), (cin, cout, 2, 2), jnp.float32) / np.sqrt(cin * 4)
        b = 0.01 * jax.random.normal(nxt(), (cout,), jnp.float32)
        return w, b

    def norm_affine(norm, c):
        if norm == "adain":
            # AdaIN weight/bias must be assigned externally in PyTorch; here they
            # are deterministic per-(sample, channel) values of shape (batch, c).
            g = 1.0 + 0.1 * jax.random.normal(nxt(), (batch, c), jnp.float32)
            be = 0.1 * jax.random.normal(nxt(), (batch, c), jnp.float32)
            return g, be
        # plain InstanceNorm2d: affine=False
        return jnp.ones((batch, c), jnp.float32), jnp.zeros((batch, c), jnp.float32)

    params = {"ndf": ndf}
    fc_out = 8 * ndf * 4 * 4
    params["fc_w"] = jax.random.normal(nxt(), (256 + 256, fc_out), jnp.float32) / np.sqrt(512)
    params["fc_b"] = 0.01 * jax.random.normal(nxt(), (fc_out,), jnp.float32)

    chain = []
    for kind, cin, cout, norm in _chain_cfg(ndf):
        if kind == "deconv":
            w, b = deconv_p(cin, cout)
            g, be = norm_affine(norm, cout)
            chain.append((kind, (w, b, g, be)))
        elif kind == "conv":
            w, b = conv_p(cin, cout, 3)
            g, be = norm_affine(norm, cout)
            chain.append((kind, (w, b, g, be)))
        else:  # res
            p1 = conv_p(cin, cout, 3) + norm_affine(norm, cout)
            p2 = conv_p(cout, cout, 3) + norm_affine(norm, cout)
            chain.append((kind, (p1, p2)))
    params["chain"] = chain

    params["out_w"] = jax.random.normal(nxt(), (output_dim, ndf), jnp.float32) / np.sqrt(ndf)
    params["out_b"] = 0.01 * jax.random.normal(nxt(), (output_dim,), jnp.float32)
    return params


# ----------------------------------------------------------------------------
# Decoder forward
# ----------------------------------------------------------------------------
def decoder_forward(x, params):
    ndf = params["ndf"]
    c8 = 8 * ndf

    # fc + LeakyReLU, viewed as (N, 8*ndf, 4, 4), carried padded-flat in bf16
    h = fc_layer(x, params["fc_w"], params["fc_b"], c8=c8)
    H = W = 4

    for kind, p in params["chain"]:
        if kind == "deconv":
            w, b, g, be = p
            h = deconv_block_pf(h, w, b, g, be, H=H, W=W)
            H, W = 2 * H, 2 * W
        elif kind == "conv":
            w, b, g, be = p
            h = conv_block_pf(h, w, b, g, be, None, H=H, W=W)
        else:  # res: x + conv2(conv1(x))
            p1, p2 = p
            w1, b1, g1, be1 = p1
            w2, b2, g2, be2 = p2
            y = conv_block_pf(h, w1, b1, g1, be1, None, H=H, W=W)
            h = conv_block_pf(y, w2, b2, g2, be2, h, H=H, W=W)

    # output 1x1 conv + sigmoid (fused), then crop away the carried padding
    return output_layer_pf(h, params["out_w"], params["out_b"], H=H, W=W)


if __name__ == "__main__":
    key = jax.random.PRNGKey(0)
    kx, kp = jax.random.split(key)

    N, ndf, output_dim = 2, 8, 3           # small config: 512 -> (2, 3, 256, 256)
    x = jax.random.normal(kx, (N, 256 + 256), jnp.float32)
    params = init_decoder_params(kp, N, ndf=ndf, output_dim=output_dim)

    out = decoder_forward(x, params)
    out = jax.block_until_ready(out)

    assert out.shape == (N, output_dim, 256, 256), out.shape
    assert bool(jnp.isfinite(out).all())
    assert bool((out >= 0.0).all() and (out <= 1.0).all())   # sigmoid range
    print("KERNEL_OK")
</pallas_src>

<mosaic_0001>
module attributes {stable_mosaic.version = 11 : i64} {
  func.func @_fc_kernel(%arg0: i32, %arg1: memref<2x512xf32, #tpu.memory_space<vmem>>, %arg2: memref<512x1024xf32, #tpu.memory_space<vmem>>, %arg3: memref<1x1024xf32, #tpu.memory_space<vmem>>, %arg4: memref<2x1024xbf16, #tpu.memory_space<vmem>>) attributes {dimension_semantics = [#tpu.dimension_semantics<parallel>], iteration_bounds = array<i64: 1>, scalar_prefetch = 0 : i64, scratch_operands = 0 : i64, tpu.core_type = #tpu.core_type<tc>, window_params = [{pipeline_mode = #tpu.pipeline_mode<synchronous>, transform_indices = @transform_0, window_bounds = array<i64: 2, 512>}, {pipeline_mode = #tpu.pipeline_mode<synchronous>, transform_indices = @transform_1, window_bounds = array<i64: 512, 1024>}, {pipeline_mode = #tpu.pipeline_mode<synchronous>, transform_indices = @transform_2, window_bounds = array<i64: 1, 1024>}, {pipeline_mode = #tpu.pipeline_mode<synchronous>, transform_indices = @transform_3, window_bounds = array<i64: 2, 1024>}]} {
    %c0 = arith.constant 0 : index
    %c0_0 = arith.constant 0 : index
    %0 = vector.load %arg1[%c0, %c0_0] : memref<2x512xf32, #tpu.memory_space<vmem>>, vector<2x512xf32>
    %1 = arith.truncf %0 : vector<2x512xf32> to vector<2x512xbf16>
    %c0_1 = arith.constant 0 : index
    %c0_2 = arith.constant 0 : index
    %2 = vector.load %arg2[%c0_1, %c0_2] : memref<512x1024xf32, #tpu.memory_space<vmem>>, vector<512x1024xf32>
    %3 = arith.truncf %2 : vector<512x1024xf32> to vector<512x1024xbf16>
    %cst = arith.constant dense<0.000000e+00> : vector<2x1024xf32>
    %4 = tpu.matmul %1, %3, %cst {dimension_numbers = #tpu.dot_dimension_numbers<[1], [0], [0], [1], [0, 0, 1, 1], [], []>} : vector<2x512xbf16>, vector<512x1024xbf16>, vector<2x1024xf32> -> vector<2x1024xf32>
    %c0_3 = arith.constant 0 : index
    %c0_4 = arith.constant 0 : index
    %5 = vector.load %arg3[%c0_3, %c0_4] : memref<1x1024xf32, #tpu.memory_space<vmem>>, vector<1x1024xf32>
    %6 = vector.broadcast %5 : vector<1x1024xf32> to vector<2x1024xf32>
    %7 = arith.addf %4, %6 : vector<2x1024xf32>
    %cst_5 = arith.constant 0.000000e+00 : f32
    %8 = vector.broadcast %cst_5 : f32 to vector<2x1024xf32>
    %9 = arith.cmpf oge, %7, %8 : vector<2x1024xf32>
    %cst_6 = arith.constant 2.000000e-01 : f32
    %10 = vector.broadcast %cst_6 : f32 to vector<2x1024xf32>
    %11 = arith.mulf %10, %7 : vector<2x1024xf32>
    %12 = arith.select %9, %7, %11 : vector<2x1024xi1>, vector<2x1024xf32>
    %13 = arith.truncf %12 : vector<2x1024xf32> to vector<2x1024xbf16>
    %c0_7 = arith.constant 0 : index
    %c0_8 = arith.constant 0 : index
    %14 = vector.load %arg4[%c0_7, %c0_8] : memref<2x1024xbf16, #tpu.memory_space<vmem>>, vector<2x1024xbf16>
    tpu.vector_store %arg4[%c0_7, %c0_8], %13 {strides = array<i32>} : memref<2x1024xbf16, #tpu.memory_space<vmem>>, vector<2x1024xbf16>,
    return
  }
  func.func @transform_0(%arg0: i32) -> (i32, i32) {
    %c0_i32 = arith.constant 0 : i32
    %c0_i32_0 = arith.constant 0 : i32
    %c0_i32_1 = arith.constant 0 : i32
    return %c0_i32, %c0_i32_0 : i32, i32
  }
  func.func @transform_1(%arg0: i32) -> (i32, i32) {
    %c0_i32 = arith.constant 0 : i32
    %c0_i32_0 = arith.constant 0 : i32
    %c0_i32_1 = arith.constant 0 : i32
    return %c0_i32, %c0_i32_0 : i32, i32
  }
  func.func @transform_2(%arg0: i32) -> (i32, i32) {
    %c0_i32 = arith.constant 0 : i32
    %c0_i32_0 = arith.constant 0 : i32
    %c0_i32_1 = arith.constant 0 : i32
    return %c0_i32, %c0_i32_0 : i32, i32
  }
  func.func @transform_3(%arg0: i32) -> (i32, i32) {
    %c0_i32 = arith.constant 0 : i32
    %c0_i32_0 = arith.constant 0 : i32
    %c0_i32_1 = arith.constant 0 : i32
    return %c0_i32, %c0_i32_0 : i32, i32
  }
}

</mosaic_0001>

<llo_original>
// kernel: fc_layer.1
$region0: #{fc_layer.1}
  #allocation0 [shape = 'u32[]', space=smem, size = 0x4, offset = 0x4, fixed_abs, tag = 'smem constant byte address 0x4 - core index']
  #allocation1 [shape = 'u32[144,128]{1,0:T(1,128)}', space=vmem, size = 0x12000, scoped, tag = 'internal scratch']
  %s0 = inlined_call_operand.hbm [shape: f32[2,512], index: 0, kind: input, shape index: {}]
  %s1 = inlined_call_operand.hbm [shape: f32[512,1024], index: 1, kind: input, shape index: {}]
  %s2 = inlined_call_operand.hbm [shape: f32[1,1024], index: 2, kind: input, shape index: {}]
  %s3 = inlined_call_operand.vmem [shape: bf16[2,1024], index: 3, kind: output, shape index: {}]
  %s4 = sld [smem:[#allocation0]]
  $region34: #{fc_layer.1} parent=0
    _
  %s6 = ssub.s32 1, %s4
  %s7 = scalar_select 0, %s6, %s4
  $region1: #{fc_layer.1} parent=0
    #allocation2 [shape = 'u8[4096]{0}', space=vmem, size = 0x1000, scoped, tag = 'input window, operand 0, single buffered']
    #allocation3 [shape = 's32[1]{0}', space=sflag, size = 0x4, scoped, tag = 'scoped memory for fc_layer.1']
    #allocation4 [shape = 'u8[2097152]{0}', space=vmem, size = 0x200000, scoped, tag = 'input window, operand 1, single buffered']
    #allocation5 [shape = 's32[1]{0}', space=sflag, size = 0x4, scoped, tag = 'scoped memory for fc_layer.1']
    #allocation6 [shape = 'u8[4096]{0}', space=vmem, size = 0x1000, scoped, tag = 'input window, operand 2, single buffered']
    %8 = vsyncpa [#allocation3], 0
    %9 = vsyncpa [#allocation5], 0
    // Predicated region
    $region2: #{fc_layer.1} parent=1 // pred_check
      _
    $region3: #{fc_layer.1} parent=1 // pred_check_branch
      %11 = sbr.rel (0) target = $region5
    $region4: #{fc_layer.1} parent=1 // pred_region
      %s13 = ssub.s32 128, 128
      %14 = vsyncadd [#allocation3], %s13
      %s16 = sshll.u32 [#allocation2], 4
      %s17 = int_to_ptr.vmem [resolvable:$true] %s16
      %19 = dma.hbm_to_vmem [thread:$0]  %s0, 128, %s17, [#allocation3]
    $region5: #{fc_layer.1} parent=1 // pred_fallthru
      _
    // Predicated region
    $region6: #{fc_layer.1} parent=1 // pred_check
      _
    $region7: #{fc_layer.1} parent=1 // pred_check_branch
      %21 = sbr.rel (0) target = $region9
    $region8: #{fc_layer.1} parent=1 // pred_region
      %s23 = ssub.s32 65536, 65536
      %24 = vsyncadd [#allocation5], %s23
      %s25 = sshll.u32 [#allocation4], 4
      %s26 = int_to_ptr.vmem [resolvable:$true] %s25
      %31 = dma.hbm_to_vmem [thread:$0]  %s1, 65536, %s26, [#allocation5], 1024, 1024, 64
    $region9: #{fc_layer.1} parent=1 // pred_fallthru
      _
    // Predicated region
    $region10: #{fc_layer.1} parent=1 // pred_check
      _
    $region11: #{fc_layer.1} parent=1 // pred_check_branch
      %33 = sbr.rel (0) target = $region13
    $region12: #{fc_layer.1} parent=1 // pred_region
      %s35 = ssub.s32 128, 128
      %36 = vsyncadd [#allocation5], %s35
      %s38 = sshll.u32 [#allocation6], 4
      %s39 = int_to_ptr.vmem [resolvable:$true] %s38
      %41 = dma.hbm_to_vmem [thread:$0]  %s2, 128, %s39, [#allocation5]
    $region13: #{fc_layer.1} parent=1 // pred_fallthru
      _
    // Predicated region
    $region14: #{fc_layer.1} parent=1 // pred_check
      _
    $region15: #{fc_layer.1} parent=1 // pred_check_branch
      %43 = sbr.rel (0) target = $region17
    $region16: #{fc_layer.1} parent=1 // pred_region
      %44 = dma.done [#allocation3], 128
    $region17: #{fc_layer.1} parent=1 // pred_fallthru
      _
    // Predicated region
    $region18: #{fc_layer.1} parent=1 // pred_check
      _
    $region19: #{fc_layer.1} parent=1 // pred_check_branch
      %46 = sbr.rel (0) target = $region21
    $region20: #{fc_layer.1} parent=1 // pred_region
      %47 = dma.done [#allocation5], 65536
    $region21: #{fc_layer.1} parent=1 // pred_fallthru
      _
    // Predicated region
    $region22: #{fc_layer.1} parent=1 // pred_check
      _
    $region23: #{fc_layer.1} parent=1 // pred_check_branch
      %49 = sbr.rel (0) target = $region25
    $region24: #{fc_layer.1} parent=1 // pred_region
      %50 = dma.done [#allocation5], 128
    $region25: #{fc_layer.1} parent=1 // pred_fallthru
      _
    %v51 = vld [vmem:[#allocation2] sm:$0xff]
    %v53 = vcombine.high %v51, %v51
    %v55 = vunpack.c.l.s4 1983009808
    %v56 = vunpack.c.0.s8 %v55
    %v57 = vlaneseq
    %v58 = vshrl.u32 %v57, 7
    %v59 = vsub.s32 %v56, %v58
    %v60 = vrot.slane %v51, %v59
    %v62 = vunpack.c.l.s4 1983009808
    %v63 = vunpack.c.0.s8 %v62
    %v64 = vlaneseq
    %v65 = vshrl.u32 %v64, 7
    %v66 = vsub.s32 %v63, %v65
    %v67 = vrot.slane %v53, %v66
    %v68 = vcombine.high %v60, %v60
    %v69 = vcombine.high %v67, %v67
    %v74 = vpack.c.bf16 %v60, %v60
    %v75 = vpack.c.bf16 %v68, %v68
    %v76 = vpack.c.bf16 %v67, %v67
    %v77 = vpack.c.bf16 %v69, %v69
    %v78 = vld [vmem:[#allocation4] sm:$0xff]
    %v79 = vld [vmem:[#allocation4 + $0x8] sm:$0xff]
    %v80 = vld [vmem:[#allocation4 + $0x10] sm:$0xff]
    %v81 = vld [vmem:[#allocation4 + $0x18] sm:$0xff]
    %v82 = vld [vmem:[#allocation4 + $0x20] sm:$0xff]
    %v83 = vld [vmem:[#allocation4 + $0x28] sm:$0xff]
    %v84 = vld [vmem:[#allocation4 + $0x30] sm:$0xff]
    %v85 = vld [vmem:[#allocation4 + $0x38] sm:$0xff]
    %v86 = vld [vmem:[#allocation4 + $0x40] sm:$0xff]
    %v87 = vld [vmem:[#allocation4 + $0x48] sm:$0xff]
    %v88 = vld [vmem:[#allocation4 + $0x50] sm:$0xff]
    %v89 = vld [vmem:[#allocation4 + $0x58] sm:$0xff]
    %v90 = vld [vmem:[#allocation4 + $0x60] sm:$0xff]
    %v91 = vld [vmem:[#allocation4 + $0x68] sm:$0xff]
    %v92 = vld [vmem:[#allocation4 + $0x70] sm:$0xff]
    %v93 = vld [vmem:[#allocation4 + $0x78] sm:$0xff]
    %v94 = vld [vmem:[#allocation4 + $0x80] sm:$0xff]
    %v95 = vld [vmem:[#allocation4 + $0x88] sm:$0xff]
    %v96 = vld [vmem:[#allocation4 + $0x90] sm:$0xff]
    %v97 = vld [vmem:[#allocation4 + $0x98] sm:$0xff]
    %v98 = vld [vmem:[#allocation4 + $0xa0] sm:$0xff]
    %v99 = vld [vmem:[#allocation4 + $0xa8] sm:$0xff]
    %v100 = vld [vmem:[#allocation4 + $0xb0] sm:$0xff]
    %v101 = vld [vmem:[#allocation4 + $0xb8] sm:$0xff]
    %v102 = vld [vmem:[#allocation4 + $0xc0] sm:$0xff]
    %v103 = vld [vmem:[#allocation4 + $0xc8] sm:$0xff]
    %v104 = vld [vmem:[#allocation4 + $0xd0] sm:$0xff]
    %v105 = vld [vmem:[#allocation4 + $0xd8] sm:$0xff]
    %v106 = vld [vmem:[#allocation4 + $0xe0] sm:$0xff]
    %v107 = vld [vmem:[#allocation4 + $0xe8] sm:$0xff]
    %v108 = vld [vmem:[#allocation4 + $0xf0] sm:$0xff]
    %v109 = vld [vmem:[#allocation4 + $0xf8] sm:$0xff]
    %v110 = vld [vmem:[#allocation4 + $0x100] sm:$0xff]
    %v111 = vld [vmem:[#allocation4 + $0x108] sm:$0xff]
    %v112 = vld [vmem:[#allocation4 + $0x110] sm:$0xff]
    %v113 = vld [vmem:[#allocation4 + $0x118] sm:$0xff]
    %v114 = vld [vmem:[#allocation4 + $0x120] sm:$0xff]
    %v115 = vld [vmem:[#allocation4 + $0x128] sm:$0xff]
    %v116 = vld [vmem:[#allocation4 + $0x130] sm:$0xff]
    %v117 = vld [vmem:[#allocation4 + $0x138] sm:$0xff]
    %v118 = vld [vmem:[#allocation4 + $0x140] sm:$0xff]
    %v119 = vld [vmem:[#allocation4 + $0x148] sm:$0xff]
    %v120 = vld [vmem:[#allocation4 + $0x150] sm:$0xff]
    %v121 = vld [vmem:[#allocation4 + $0x158] sm:$0xff]
    %v122 = vld [vmem:[#allocation4 + $0x160] sm:$0xff]
    %v123 = vld [vmem:[#allocation4 + $0x168] sm:$0xff]
    %v124 = vld [vmem:[#allocation4 + $0x170] sm:$0xff]
    %v125 = vld [vmem:[#allocation4 + $0x178] sm:$0xff]
    %v126 = vld [vmem:[#allocation4 + $0x180] sm:$0xff]
    %v127 = vld [vmem:[#allocation4 + $0x188] sm:$0xff]
    %v128 = vld [vmem:[#allocation4 + $0x190] sm:$0xff]
    %v129 = vld [vmem:[#allocation4 + $0x198] sm:$0xff]
    %v130 = vld [vmem:[#allocation4 + $0x1a0] sm:$0xff]
    %v131 = vld [vmem:[#allocation4 + $0x1a8] sm:$0xff]
    %v132 = vld [vmem:[#allocation4 + $0x1b0] sm:$0xff]
    %v133 = vld [vmem:[#allocation4 + $0x1b8] sm:$0xff]
    %v134 = vld [vmem:[#allocation4 + $0x1c0] sm:$0xff]
    %v135 = vld [vmem:[#allocation4 + $0x1c8] sm:$0xff]
    %v136 = vld [vmem:[#allocation4 + $0x1d0] sm:$0xff]
    %v137 = vld [vmem:[#allocation4 + $0x1d8] sm:$0xff]
    %v138 = vld [vmem:[#allocation4 + $0x1e0] sm:$0xff]
    %v139 = vld [vmem:[#allocation4 + $0x1e8] sm:$0xff]
    %v140 = vld [vmem:[#allocation4 + $0x1f0] sm:$0xff]
    %v141 = vld [vmem:[#allocation4 + $0x1f8] sm:$0xff]
    %v142 = vld [vmem:[#allocation4 + $0x200] sm:$0xff]
    %v143 = vld [vmem:[#allocation4 + $0x208] sm:$0xff]
    %v144 = vld [vmem:[#allocation4 + $0x210] sm:$0xff]
    %v145 = vld [vmem:[#allocation4 + $0x218] sm:$0xff]
    %v146 = vld [vmem:[#allocation4 + $0x220] sm:$0xff]
    %v147 = vld [vmem:[#allocation4 + $0x228] sm:$0xff]
    %v148 = vld [vmem:[#allocation4 + $0x230] sm:$0xff]
    %v149 = vld [vmem:[#allocation4 + $0x238] sm:$0xff]
    %v150 = vld [vmem:[#allocation4 + $0x240] sm:$0xff]
    %v151 = vld [vmem:[#allocation4 + $0x248] sm:$0xff]
    %v152 = vld [vmem:[#allocation4 + $0x250] sm:$0xff]
    %v153 = vld [vmem:[#allocation4 + $0x258] sm:$0xff]
    %v154 = vld [vmem:[#allocation4 + $0x260] sm:$0xff]
    %v155 = vld [vmem:[#allocation4 + $0x268] sm:$0xff]
    %v156 = vld [vmem:[#allocation4 + $0x270] sm:$0xff]
    %v157 = vld [vmem:[#allocation4 + $0x278] sm:$0xff]
    %v158 = vld [vmem:[#allocation4 + $0x280] sm:$0xff]
    %v159 = vld [vmem:[#allocation4 + $0x288] sm:$0xff]
    %v160 = vld [vmem:[#allocation4 + $0x290] sm:$0xff]
    %v161 = vld [vmem:[#allocation4 + $0x298] sm:$0xff]
    %v162 = vld [vmem:[#allocation4 + $0x2a0] sm:$0xff]
    %v163 = vld [vmem:[#allocation4 + $0x2a8] sm:$0xff]
    %v164 = vld [vmem:[#allocation4 + $0x2b0] sm:$0xff]
    %v165 = vld [vmem:[#allocation4 + $0x2b8] sm:$0xff]
    %v166 = vld [vmem:[#allocation4 + $0x2c0] sm:$0xff]
    %v167 = vld [vmem:[#allocation4 + $0x2c8] sm:$0xff]
    %v168 = vld [vmem:[#allocation4 + $0x2d0] sm:$0xff]
    %v169 = vld [vmem:[#allocation4 + $0x2d8] sm:$0xff]
    %v170 = vld [vmem:[#allocation4 + $0x2e0] sm:$0xff]
    %v171 = vld [vmem:[#allocation4 + $0x2e8] sm:$0xff]
    %v172 = vld [vmem:[#allocation4 + $0x2f0] sm:$0xff]
    %v173 = vld [vmem:[#allocation4 + $0x2f8] sm:$0xff]
    %v174 = vld [vmem:[#allocation4 + $0x300] sm:$0xff]
    %v175 = vld [vmem:[#allocation4 + $0x308] sm:$0xff]
    %v176 = vld [vmem:[#allocation4 + $0x310] sm:$0xff]
    %v177 = vld [vmem:[#allocation4 + $0x318] sm:$0xff]
    %v178 = vld [vmem:[#allocation4 + $0x320] sm:$0xff]
    %v179 = vld [vmem:[#allocation4 + $0x328] sm:$0xff]
    %v180 = vld [vmem:[#allocation4 + $0x330] sm:$0xff]
    %v181 = vld [vmem:[#allocation4 + $0x338] sm:$0xff]
    %v182 = vld [vmem:[#allocation4 + $0x340] sm:$0xff]
    %v183 = vld [vmem:[#allocation4 + $0x348] sm:$0xff]
    %v184 = vld [vmem:[#allocation4 + $0x350] sm:$0xff]
    %v185 = vld [vmem:[#allocation4 + $0x358] sm:$0xff]
    %v186 = vld [vmem:[#allocation4 + $0x360] sm:$0xff]
    %v187 = vld [vmem:[#allocation4 + $0x368] sm:$0xff]
    %v188 = vld [vmem:[#allocation4 + $0x370] sm:$0xff]
    %v189 = vld [vmem:[#allocation4 + $0x378] sm:$0xff]
    %v190 = vld [vmem:[#allocation4 + $0x380] sm:$0xff]
    %v191 = vld [vmem:[#allocation4 + $0x388] sm:$0xff]
    %v192 = vld [vmem:[#allocation4 + $0x390] sm:$0xff]
    %v193 = vld [vmem:[#allocation4 + $0x398] sm:$0xff]
    %v194 = vld [vmem:[#allocation4 + $0x3a0] sm:$0xff]
    %v195 = vld [vmem:[#allocation4 + $0x3a8] sm:$0xff]
    %v196 = vld [vmem:[#allocation4 + $0x3b0] sm:$0xff]
    %v197 = vld [vmem:[#allocation4 + $0x3b8] sm:$0xff]
    %v198 = vld [vmem:[#allocation4 + $0x3c0] sm:$0xff]
    %v199 = vld [vmem:[#allocation4 + $0x3c8] sm:$0xff]
    %v200 = vld [vmem:[#allocation4 + $0x3d0] sm:$0xff]
    %v201 = vld [vmem:[#allocation4 + $0x3d8] sm:$0xff]
    %v202 = vld [vmem:[#allocation4 + $0x3e0] sm:$0xff]
    %v203 = vld [vmem:[#allocation4 + $0x3e8] sm:$0xff]
    %v204 = vld [vmem:[#allocation4 + $0x3f0] sm:$0xff]
    %v205 = vld [vmem:[#allocation4 + $0x3f8] sm:$0xff]
    %v206 = vld [vmem:[#allocation4 + $0x400] sm:$0xff]
    %v207 = vld [vmem:[#allocation4 + $0x408] sm:$0xff]
    %v208 = vld [vmem:[#allocation4 + $0x410] sm:$0xff]
    %v209 = vld [vmem:[#allocation4 + $0x418] sm:$0xff]
    %v210 = vld [vmem:[#allocation4 + $0x420] sm:$0xff]
    %v211 = vld [vmem:[#allocation4 + $0x428] sm:$0xff]
    %v212 = vld [vmem:[#allocation4 + $0x430] sm:$0xff]
    %v213 = vld [vmem:[#allocation4 + $0x438] sm:$0xff]
    %v214 = vld [vmem:[#allocation4 + $0x440] sm:$0xff]
    %v215 = vld [vmem:[#allocation4 + $0x448] sm:$0xff]
    %v216 = vld [vmem:[#allocation4 + $0x450] sm:$0xff]
    %v217 = vld [vmem:[#allocation4 + $0x458] sm:$0xff]
    %v218 = vld [vmem:[#allocation4 + $0x460] sm:$0xff]
    %v219 = vld [vmem:[#allocation4 + $0x468] sm:$0xff]
    %v220 = vld [vmem:[#allocation4 + $0x470] sm:$0xff]
    %v221 = vld [vmem:[#allocation4 + $0x478] sm:$0xff]
    %v222 = vld [vmem:[#allocation4 + $0x480] sm:$0xff]
    %v223 = vld [vmem:[#allocation4 + $0x488] sm:$0xff]
    %v224 = vld [vmem:[#allocation4 + $0x490] sm:$0xff]
    %v225 = vld [vmem:[#allocation4 + $0x498] sm:$0xff]
    %v226 = vld [vmem:[#allocation4 + $0x4a0] sm:$0xff]
    %v227 = vld [vmem:[#allocation4 + $0x4a8] sm:$0xff]
    %v228 = vld [vmem:[#allocation4 + $0x4b0] sm:$0xff]
    %v229 = vld [vmem:[#allocation4 + $0x4b8] sm:$0xff]
    %v230 = vld [vmem:[#allocation4 + $0x4c0] sm:$0xff]
    %v231 = vld [vmem:[#allocation4 + $0x4c8] sm:$0xff]
    %v232 = vld [vmem:[#allocation4 + $0x4d0] sm:$0xff]
    %v233 = vld [vmem:[#allocation4 + $0x4d8] sm:$0xff]
    %v234 = vld [vmem:[#allocation4 + $0x4e0] sm:$0xff]
    %v235 = vld [vmem:[#allocation4 + $0x4e8] sm:$0xff]
    %v236 = vld [vmem:[#allocation4 + $0x4f0] sm:$0xff]
    %v237 = vld [vmem:[#allocation4 + $0x4f8] sm:$0xff]
    %v238 = vld [vmem:[#allocation4 + $0x500] sm:$0xff]
    %v239 = vld [vmem:[#allocation4 + $0x508] sm:$0xff]
    %v240 = vld [vmem:[#allocation4 + $0x510] sm:$0xff]
    %v241 = vld [vmem:[#allocation4 + $0x518] sm:$0xff]
    %v242 = vld [vmem:[#allocation4 + $0x520] sm:$0xff]
    %v243 = vld [vmem:[#allocation4 + $0x528] sm:$0xff]
    %v244 = vld [vmem:[#allocation4 + $0x530] sm:$0xff]
    %v245 = vld [vmem:[#allocation4 + $0x538] sm:$0xff]
    %v246 = vld [vmem:[#allocation4 + $0x540] sm:$0xff]
    %v247 = vld [vmem:[#allocation4 + $0x548] sm:$0xff]
    %v248 = vld [vmem:[#allocation4 + $0x550] sm:$0xff]
    %v249 = vld [vmem:[#allocation4 + $0x558] sm:$0xff]
    %v250 = vld [vmem:[#allocation4 + $0x560] sm:$0xff]
    %v251 = vld [vmem:[#allocation4 + $0x568] sm:$0xff]
    %v252 = vld [vmem:[#allocation4 + $0x570] sm:$0xff]
    %v253 = vld [vmem:[#allocation4 + $0x578] sm:$0xff]
    %v254 = vld [vmem:[#allocation4 + $0x580] sm:$0xff]
    %v255 = vld [vmem:[#allocation4 + $0x588] sm:$0xff]
    %v256 = vld [vmem:[#allocation4 + $0x590] sm:$0xff]
    %v257 = vld [vmem:[#allocation4 + $0x598] sm:$0xff]
    %v258 = vld [vmem:[#allocation4 + $0x5a0] sm:$0xff]
    %v259 = vld [vmem:[#allocation4 + $0x5a8] sm:$0xff]
    %v260 = vld [vmem:[#allocation4 + $0x5b0] sm:$0xff]
    %v261 = vld [vmem:[#allocation4 + $0x5b8] sm:$0xff]
    %v262 = vld [vmem:[#allocation4 + $0x5c0] sm:$0xff]
    %v263 = vld [vmem:[#allocation4 + $0x5c8] sm:$0xff]
    %v264 = vld [vmem:[#allocation4 + $0x5d0] sm:$0xff]
    %v265 = vld [vmem:[#allocation4 + $0x5d8] sm:$0xff]
    %v266 = vld [vmem:[#allocation4 + $0x5e0] sm:$0xff]
    %v267 = vld [vmem:[#allocation4 + $0x5e8] sm:$0xff]
    %v268 = vld [vmem:[#allocation4 + $0x5f0] sm:$0xff]
    %v269 = vld [vmem:[#allocation4 + $0x5f8] sm:$0xff]
    %v270 = vld [vmem:[#allocation4 + $0x600] sm:$0xff]
    %v271 = vld [vmem:[#allocation4 + $0x608] sm:$0xff]
    %v272 = vld [vmem:[#allocation4 + $0x610] sm:$0xff]
    %v273 = vld [vmem:[#allocation4 + $0x618] sm:$0xff]
    %v274 = vld [vmem:[#allocation4 + $0x620] sm:$0xff]
    %v275 = vld [vmem:[#allocation4 + $0x628] sm:$0xff]
    %v276 = vld [vmem:[#allocation4 + $0x630] sm:$0xff]
    %v277 = vld [vmem:[#allocation4 + $0x638] sm:$0xff]
    %v278 = vld [vmem:[#allocation4 + $0x640] sm:$0xff]
    %v279 = vld [vmem:[#allocation4 + $0x648] sm:$0xff]
    %v280 = vld [vmem:[#allocation4 + $0x650] sm:$0xff]
    %v281 = vld [vmem:[#allocation4 + $0x658] sm:$0xff]
    %v282 = vld [vmem:[#allocation4 + $0x660] sm:$0xff]
    %v283 = vld [vmem:[#allocation4 + $0x668] sm:$0xff]
    %v284 = vld [vmem:[#allocation4 + $0x670] sm:$0xff]
    %v285 = vld [vmem:[#allocation4 + $0x678] sm:$0xff]
    %v286 = vld [vmem:[#allocation4 + $0x680] sm:$0xff]
    %v287 = vld [vmem:[#allocation4 + $0x688] sm:$0xff]
    %v288 = vld [vmem:[#allocation4 + $0x690] sm:$0xff]
    %v289 = vld [vmem:[#allocation4 + $0x698] sm:$0xff]
    %v290 = vld [vmem:[#allocation4 + $0x6a0] sm:$0xff]
    %v291 = vld [vmem:[#allocation4 + $0x6a8] sm:$0xff]
    %v292 = vld [vmem:[#allocation4 + $0x6b0] sm:$0xff]
    %v293 = vld [vmem:[#allocation4 + $0x6b8] sm:$0xff]
    %v294 = vld [vmem:[#allocation4 + $0x6c0] sm:$0xff]
    %v295 = vld [vmem:[#allocation4 + $0x6c8] sm:$0xff]
    %v296 = vld [vmem:[#allocation4 + $0x6d0] sm:$0xff]
    %v297 = vld [vmem:[#allocation4 + $0x6d8] sm:$0xff]
    %v298 = vld [vmem:[#allocation4 + $0x6e0] sm:$0xff]
    %v299 = vld [vmem:[#allocation4 + $0x6e8] sm:$0xff]
    %v300 = vld [vmem:[#allocation4 + $0x6f0] sm:$0xff]
    %v301 = vld [vmem:[#allocation4 + $0x6f8] sm:$0xff]
    %v302 = vld [vmem:[#allocation4 + $0x700] sm:$0xff]
    %v303 = vld [vmem:[#allocation4 + $0x708] sm:$0xff]
    %v304 = vld [vmem:[#allocation4 + $0x710] sm:$0xff]
    %v305 = vld [vmem:[#allocation4 + $0x718] sm:$0xff]
    %v306 = vld [vmem:[#allocation4 + $0x720] sm:$0xff]
    %v307 = vld [vmem:[#allocation4 + $0x728] sm:$0xff]
    %v308 = vld [vmem:[#allocation4 + $0x730] sm:$0xff]
    %v309 = vld [vmem:[#allocation4 + $0x738] sm:$0xff]
    %v310 = vld [vmem:[#allocation4 + $0x740] sm:$0xff]
    %v311 = vld [vmem:[#allocation4 + $0x748] sm:$0xff]
    %v312 = vld [vmem:[#allocation4 + $0x750] sm:$0xff]
    %v313 = vld [vmem:[#allocation4 + $0x758] sm:$0xff]
    %v314 = vld [vmem:[#allocation4 + $0x760] sm:$0xff]
    %v315 = vld [vmem:[#allocation4 + $0x768] sm:$0xff]
    %v316 = vld [vmem:[#allocation4 + $0x770] sm:$0xff]
    %v317 = vld [vmem:[#allocation4 + $0x778] sm:$0xff]
    %v318 = vld [vmem:[#allocation4 + $0x780] sm:$0xff]
    %v319 = vld [vmem:[#allocation4 + $0x788] sm:$0xff]
    %v320 = vld [vmem:[#allocation4 + $0x790] sm:$0xff]
    %v321 = vld [vmem:[#allocation4 + $0x798] sm:$0xff]
    %v322 = vld [vmem:[#allocation4 + $0x7a0] sm:$0xff]
    %v323 = vld [vmem:[#allocation4 + $0x7a8] sm:$0xff]
    %v324 = vld [vmem:[#allocation4 + $0x7b0] sm:$0xff]
    %v325 = vld [vmem:[#allocation4 + $0x7b8] sm:$0xff]
    %v326 = vld [vmem:[#allocation4 + $0x7c0] sm:$0xff]
    %v327 = vld [vmem:[#allocation4 + $0x7c8] sm:$0xff]
    %v328 = vld [vmem:[#allocation4 + $0x7d0] sm:$0xff]
    %v329 = vld [vmem:[#allocation4 + $0x7d8] sm:$0xff]
    %v330 = vld [vmem:[#allocation4 + $0x7e0] sm:$0xff]
    %v331 = vld [vmem:[#allocation4 + $0x7e8] sm:$0xff]
    %v332 = vld [vmem:[#allocation4 + $0x7f0] sm:$0xff]
    %v333 = vld [vmem:[#allocation4 + $0x7f8] sm:$0xff]
    %v334 = vld [vmem:[#allocation4 + $0x800] sm:$0xff]
    %v335 = vld [vmem:[#allocation4 + $0x808] sm:$0xff]
    %v336 = vld [vmem:[#allocation4 + $0x810] sm:$0xff]
    %v337 = vld [vmem:[#allocation4 + $0x818] sm:$0xff]
    %v338 = vld [vmem:[#allocation4 + $0x820] sm:$0xff]
    %v339 = vld [vmem:[#allocation4 + $0x828] sm:$0xff]
    %v340 = vld [vmem:[#allocation4 + $0x830] sm:$0xff]
    %v341 = vld [vmem:[#allocation4 + $0x838] sm:$0xff]
    %v342 = vld [vmem:[#allocation4 + $0x840] sm:$0xff]
    %v343 = vld [vmem:[#allocation4 + $0x848] sm:$0xff]
    %v344 = vld [vmem:[#allocation4 + $0x850] sm:$0xff]
    %v345 = vld [vmem:[#allocation4 + $0x858] sm:$0xff]
    %v346 = vld [vmem:[#allocation4 + $0x860] sm:$0xff]
    %v347 = vld [vmem:[#allocation4 + $0x868] sm:$0xff]
    %v348 = vld [vmem:[#allocation4 + $0x870] sm:$0xff]
    %v349 = vld [vmem:[#allocation4 + $0x878] sm:$0xff]
    %v350 = vld [vmem:[#allocation4 + $0x880] sm:$0xff]
    %v351 = vld [vmem:[#allocation4 + $0x888] sm:$0xff]
    %v352 = vld [vmem:[#allocation4 + $0x890] sm:$0xff]
    %v353 = vld [vmem:[#allocation4 + $0x898] sm:$0xff]
    %v354 = vld [vmem:[#allocation4 + $0x8a0] sm:$0xff]
    %v355 = vld [vmem:[#allocation4 + $0x8a8] sm:$0xff]
    %v356 = vld [vmem:[#allocation4 + $0x8b0] sm:$0xff]
    %v357 = vld [vmem:[#allocation4 + $0x8b8] sm:$0xff]
    %v358 = vld [vmem:[#allocation4 + $0x8c0] sm:$0xff]
    %v359 = vld [vmem:[#allocation4 + $0x8c8] sm:$0xff]
    %v360 = vld [vmem:[#allocation4 + $0x8d0] sm:$0xff]
    %v361 = vld [vmem:[#allocation4 + $0x8d8] sm:$0xff]
    %v362 = vld [vmem:[#allocation4 + $0x8e0] sm:$0xff]
    %v363 = vld [vmem:[#allocation4 + $0x8e8] sm:$0xff]
    %v364 = vld [vmem:[#allocation4 + $0x8f0] sm:$0xff]
    %v365 = vld [vmem:[#allocation4 + $0x8f8] sm:$0xff]
    %v366 = vld [vmem:[#allocation4 + $0x900] sm:$0xff]
    %v367 = vld [vmem:[#allocation4 + $0x908] sm:$0xff]
    %v368 = vld [vmem:[#allocation4 + $0x910] sm:$0xff]
    %v369 = vld [vmem:[#allocation4 + $0x918] sm:$0xff]
    %v370 = vld [vmem:[#allocation4 + $0x920] sm:$0xff]
    %v371 = vld [vmem:[#allocation4 + $0x928] sm:$0xff]
    %v372 = vld [vmem:[#allocation4 + $0x930] sm:$0xff]
    %v373 = vld [vmem:[#allocation4 + $0x938] sm:$0xff]
    %v374 = vld [vmem:[#allocation4 + $0x940] sm:$0xff]
    %v375 = vld [vmem:[#allocation4 + $0x948] sm:$0xff]
    %v376 = vld [vmem:[#allocation4 + $0x950] sm:$0xff]
    %v377 = vld [vmem:[#allocation4 + $0x958] sm:$0xff]
    %v378 = vld [vmem:[#allocation4 + $0x960] sm:$0xff]
    %v379 = vld [vmem:[#allocation4 + $0x968] sm:$0xff]
    %v380 = vld [vmem:[#allocation4 + $0x970] sm:$0xff]
    %v381 = vld [vmem:[#allocation4 + $0x978] sm:$0xff]
    %v382 = vld [vmem:[#allocation4 + $0x980] sm:$0xff]
    %v383 = vld [vmem:[#allocation4 + $0x988] sm:$0xff]
    %v384 = vld [vmem:[#allocation4 + $0x990] sm:$0xff]
    %v385 = vld [vmem:[#allocation4 + $0x998] sm:$0xff]
    %v386 = vld [vmem:[#allocation4 + $0x9a0] sm:$0xff]
    %v387 = vld [vmem:[#allocation4 + $0x9a8] sm:$0xff]
    %v388 = vld [vmem:[#allocation4 + $0x9b0] sm:$0xff]
    %v389 = vld [vmem:[#allocation4 + $0x9b8] sm:$0xff]
    %v390 = vld [vmem:[#allocation4 + $0x9c0] sm:$0xff]
    %v391 = vld [vmem:[#allocation4 + $0x9c8] sm:$0xff]
    %v392 = vld [vmem:[#allocation4 + $0x9d0] sm:$0xff]
    %v393 = vld [vmem:[#allocation4 + $0x9d8] sm:$0xff]
    %v394 = vld [vmem:[#allocation4 + $0x9e0] sm:$0xff]
    %v395 = vld [vmem:[#allocation4 + $0x9e8] sm:$0xff]
    %v396 = vld [vmem:[#allocation4 + $0x9f0] sm:$0xff]
    %v397 = vld [vmem:[#allocation4 + $0x9f8] sm:$0xff]
    %v398 = vld [vmem:[#allocation4 + $0xa00] sm:$0xff]
    %v399 = vld [vmem:[#allocation4 + $0xa08] sm:$0xff]
    %v400 = vld [vmem:[#allocation4 + $0xa10] sm:$0xff]
    %v401 = vld [vmem:[#allocation4 + $0xa18] sm:$0xff]
    %v402 = vld [vmem:[#allocation4 + $0xa20] sm:$0xff]
    %v403 = vld [vmem:[#allocation4 + $0xa28] sm:$0xff]
    %v404 = vld [vmem:[#allocation4 + $0xa30] sm:$0xff]
    %v405 = vld [vmem:[#allocation4 + $0xa38] sm:$0xff]
    %v406 = vld [vmem:[#allocation4 + $0xa40] sm:$0xff]
    %v407 = vld [vmem:[#allocation4 + $0xa48] sm:$0xff]
    %v408 = vld [vmem:[#allocation4 + $0xa50] sm:$0xff]
    %v409 = vld [vmem:[#allocation4 + $0xa58] sm:$0xff]
    %v410 = vld [vmem:[#allocation4 + $0xa60] sm:$0xff]
    %v411 = vld [vmem:[#allocation4 + $0xa68] sm:$0xff]
    %v412 = vld [vmem:[#allocation4 + $0xa70] sm:$0xff]
    %v413 = vld [vmem:[#allocation4 + $0xa78] sm:$0xff]
    %v414 = vld [vmem:[#allocation4 + $0xa80] sm:$0xff]
    %v415 = vld [vmem:[#allocation4 + $0xa88] sm:$0xff]
    %v416 = vld [vmem:[#allocation4 + $0xa90] sm:$0xff]
    %v417 = vld [vmem:[#allocation4 + $0xa98] sm:$0xff]
    %v418 = vld [vmem:[#allocation4 + $0xaa0] sm:$0xff]
    %v419 = vld [vmem:[#allocation4 + $0xaa8] sm:$0xff]
    %v420 = vld [vmem:[#allocation4 + $0xab0] sm:$0xff]
    %v421 = vld [vmem:[#allocation4 + $0xab8] sm:$0xff]
    %v422 = vld [vmem:[#allocation4 + $0xac0] sm:$0xff]
    %v423 = vld [vmem:[#allocation4 + $0xac8] sm:$0xff]
    %v424 = vld [vmem:[#allocation4 + $0xad0] sm:$0xff]
    %v425 = vld [vmem:[#allocation4 + $0xad8] sm:$0xff]
    %v426 = vld [vmem:[#allocation4 + $0xae0] sm:$0xff]
    %v427 = vld [vmem:[#allocation4 + $0xae8] sm:$0xff]
    %v428 = vld [vmem:[#allocation4 + $0xaf0] sm:$0xff]
    %v429 = vld [vmem:[#allocation4 + $0xaf8] sm:$0xff]
    %v430 = vld [vmem:[#allocation4 + $0xb00] sm:$0xff]
    %v431 = vld [vmem:[#allocation4 + $0xb08] sm:$0xff]
    %v432 = vld [vmem:[#allocation4 + $0xb10] sm:$0xff]
    %v433 = vld [vmem:[#allocation4 + $0xb18] sm:$0xff]
    %v434 = vld [vmem:[#allocation4 + $0xb20] sm:$0xff]
    %v435 = vld [vmem:[#allocation4 + $0xb28] sm:$0xff]
    %v436 = vld [vmem:[#allocation4 + $0xb30] sm:$0xff]
    %v437 = vld [vmem:[#allocation4 + $0xb38] sm:$0xff]
    %v438 = vld [vmem:[#allocation4 + $0xb40] sm:$0xff]
    %v439 = vld [vmem:[#allocation4 + $0xb48] sm:$0xff]
    %v440 = vld [vmem:[#allocation4 + $0xb50] sm:$0xff]
    %v441 = vld [vmem:[#allocation4 + $0xb58] sm:$0xff]
    %v442 = vld [vmem:[#allocation4 + $0xb60] sm:$0xff]
    %v443 = vld [vmem:[#allocation4 + $0xb68] sm:$0xff]
    %v444 = vld [vmem:[#allocation4 + $0xb70] sm:$0xff]
    %v445 = vld [vmem:[#allocation4 + $0xb78] sm:$0xff]
    %v446 = vld [vmem:[#allocation4 + $0xb80] sm:$0xff]
    %v447 = vld [vmem:[#allocation4 + $0xb88] sm:$0xff]
    %v448 = vld [vmem:[#allocation4 + $0xb90] sm:$0xff]
    %v449 = vld [vmem:[#allocation4 + $0xb98] sm:$0xff]
    %v450 = vld [vmem:[#allocation4 + $0xba0] sm:$0xff]
    %v451 = vld [vmem:[#allocation4 + $0xba8] sm:$0xff]
    %v452 = vld [vmem:[#allocation4 + $0xbb0] sm:$0xff]
    %v453 = vld [vmem:[#allocation4 + $0xbb8] sm:$0xff]
    %v454 = vld [vmem:[#allocation4 + $0xbc0] sm:$0xff]
    %v455 = vld [vmem:[#allocation4 + $0xbc8] sm:$0xff]
    %v456 = vld [vmem:[#allocation4 + $0xbd0] sm:$0xff]
    %v457 = vld [vmem:[#allocation4 + $0xbd8] sm:$0xff]
    %v458 = vld [vmem:[#allocation4 + $0xbe0] sm:$0xff]
    %v459 = vld [vmem:[#allocation4 + $0xbe8] sm:$0xff]
    %v460 = vld [vmem:[#allocation4 + $0xbf0] sm:$0xff]
    %v461 = vld [vmem:[#allocation4 + $0xbf8] sm:$0xff]
    %v462 = vld [vmem:[#allocation4 + $0xc00] sm:$0xff]
    %v463 = vld [vmem:[#allocation4 + $0xc08] sm:$0xff]
    %v464 = vld [vmem:[#allocation4 + $0xc10] sm:$0xff]
    %v465 = vld [vmem:[#allocation4 + $0xc18] sm:$0xff]
    %v466 = vld [vmem:[#allocation4 + $0xc20] sm:$0xff]
    %v467 = vld [vmem:[#allocation4 + $0xc28] sm:$0xff]
    %v468 = vld [vmem:[#allocation4 + $0xc30] sm:$0xff]
    %v469 = vld [vmem:[#allocation4 + $0xc38] sm:$0xff]
    %v470 = vld [vmem:[#allocation4 + $0xc40] sm:$0xff]
    %v471 = vld [vmem:[#allocation4 + $0xc48] sm:$0xff]
    %v472 = vld [vmem:[#allocation4 + $0xc50] sm:$0xff]
    %v473 = vld [vmem:[#allocation4 + $0xc58] sm:$0xff]
    %v474 = vld [vmem:[#allocation4 + $0xc60] sm:$0xff]
    %v475 = vld [vmem:[#allocation4 + $0xc68] sm:$0xff]
    %v476 = vld [vmem:[#allocation4 + $0xc70] sm:$0xff]
    %v477 = vld [vmem:[#allocation4 + $0xc78] sm:$0xff]
    %v478 = vld [vmem:[#allocation4 + $0xc80] sm:$0xff]
    %v479 = vld [vmem:[#allocation4 + $0xc88] sm:$0xff]
    %v480 = vld [vmem:[#allocation4 + $0xc90] sm:$0xff]
    %v481 = vld [vmem:[#allocation4 + $0xc98] sm:$0xff]
    %v482 = vld [vmem:[#allocation4 + $0xca0] sm:$0xff]
    %v483 = vld [vmem:[#allocation4 + $0xca8] sm:$0xff]
    %v484 = vld [vmem:[#allocation4 + $0xcb0] sm:$0xff]
    %v485 = vld [vmem:[#allocation4 + $0xcb8] sm:$0xff]
    %v486 = vld [vmem:[#allocation4 + $0xcc0] sm:$0xff]
    %v487 = vld [vmem:[#allocation4 + $0xcc8] sm:$0xff]
    %v488 = vld [vmem:[#allocation4 + $0xcd0] sm:$0xff]
    %v489 = vld [vmem:[#allocation4 + $0xcd8] sm:$0xff]
    %v490 = vld [vmem:[#allocation4 + $0xce0] sm:$0xff]
    %v491 = vld [vmem:[#allocation4 + $0xce8] sm:$0xff]
    %v492 = vld [vmem:[#allocation4 + $0xcf0] sm:$0xff]
    %v493 = vld [vmem:[#allocation4 + $0xcf8] sm:$0xff]
    %v494 = vld [vmem:[#allocation4 + $0xd00] sm:$0xff]
    %v495 = vld [vmem:[#allocation4 + $0xd08] sm:$0xff]
    %v496 = vld [vmem:[#allocation4 + $0xd10] sm:$0xff]
    %v497 = vld [vmem:[#allocation4 + $0xd18] sm:$0xff]
    %v498 = vld [vmem:[#allocation4 + $0xd20] sm:$0xff]
    %v499 = vld [vmem:[#allocation4 + $0xd28] sm:$0xff]
    %v500 = vld [vmem:[#allocation4 + $0xd30] sm:$0xff]
    %v501 = vld [vmem:[#allocation4 + $0xd38] sm:$0xff]
    %v502 = vld [vmem:[#allocation4 + $0xd40] sm:$0xff]
    %v503 = vld [vmem:[#allocation4 + $0xd48] sm:$0xff]
    %v504 = vld [vmem:[#allocation4 + $0xd50] sm:$0xff]
    %v505 = vld [vmem:[#allocation4 + $0xd58] sm:$0xff]
    %v506 = vld [vmem:[#allocation4 + $0xd60] sm:$0xff]
    %v507 = vld [vmem:[#allocation4 + $0xd68] sm:$0xff]
    %v508 = vld [vmem:[#allocation4 + $0xd70] sm:$0xff]
    %v509 = vld [vmem:[#allocation4 + $0xd78] sm:$0xff]
    %v510 = vld [vmem:[#allocation4 + $0xd80] sm:$0xff]
    %v511 = vld [vmem:[#allocation4 + $0xd88] sm:$0xff]
    %v512 = vld [vmem:[#allocation4 + $0xd90] sm:$0xff]
    %v513 = vld [vmem:[#allocation4 + $0xd98] sm:$0xff]
    %v514 = vld [vmem:[#allocation4 + $0xda0] sm:$0xff]
    %v515 = vld [vmem:[#allocation4 + $0xda8] sm:$0xff]
    %v516 = vld [vmem:[#allocation4 + $0xdb0] sm:$0xff]
    %v517 = vld [vmem:[#allocation4 + $0xdb8] sm:$0xff]
    %v518 = vld [vmem:[#allocation4 + $0xdc0] sm:$0xff]
    %v519 = vld [vmem:[#allocation4 + $0xdc8] sm:$0xff]
    %v520 = vld [vmem:[#allocation4 + $0xdd0] sm:$0xff]
    %v521 = vld [vmem:[#allocation4 + $0xdd8] sm:$0xff]
    %v522 = vld [vmem:[#allocation4 + $0xde0] sm:$0xff]
    %v523 = vld [vmem:[#allocation4 + $0xde8] sm:$0xff]
    %v524 = vld [vmem:[#allocation4 + $0xdf0] sm:$0xff]
    %v525 = vld [vmem:[#allocation4 + $0xdf8] sm:$0xff]
    %v526 = vld [vmem:[#allocation4 + $0xe00] sm:$0xff]
    %v527 = vld [vmem:[#allocation4 + $0xe08] sm:$0xff]
    %v528 = vld [vmem:[#allocation4 + $0xe10] sm:$0xff]
    %v529 = vld [vmem:[#allocation4 + $0xe18] sm:$0xff]
    %v530 = vld [vmem:[#allocation4 + $0xe20] sm:$0xff]
    %v531 = vld [vmem:[#allocation4 + $0xe28] sm:$0xff]
    %v532 = vld [vmem:[#allocation4 + $0xe30] sm:$0xff]
    %v533 = vld [vmem:[#allocation4 + $0xe38] sm:$0xff]
    %v534 = vld [vmem:[#allocation4 + $0xe40] sm:$0xff]
    %v535 = vld [vmem:[#allocation4 + $0xe48] sm:$0xff]
    %v536 = vld [vmem:[#allocation4 + $0xe50] sm:$0xff]
    %v537 = vld [vmem:[#allocation4 + $0xe58] sm:$0xff]
    %v538 = vld [vmem:[#allocation4 + $0xe60] sm:$0xff]
    %v539 = vld [vmem:[#allocation4 + $0xe68] sm:$0xff]
    %v540 = vld [vmem:[#allocation4 + $0xe70] sm:$0xff]
    %v541 = vld [vmem:[#allocation4 + $0xe78] sm:$0xff]
    %v542 = vld [vmem:[#allocation4 + $0xe80] sm:$0xff]
    %v543 = vld [vmem:[#allocation4 + $0xe88] sm:$0xff]
    %v544 = vld [vmem:[#allocation4 + $0xe90] sm:$0xff]
    %v545 = vld [vmem:[#allocation4 + $0xe98] sm:$0xff]
    %v546 = vld [vmem:[#allocation4 + $0xea0] sm:$0xff]
    %v547 = vld [vmem:[#allocation4 + $0xea8] sm:$0xff]
    %v548 = vld [vmem:[#allocation4 + $0xeb0] sm:$0xff]
    %v549 = vld [vmem:[#allocation4 + $0xeb8] sm:$0xff]
    %v550 = vld [vmem:[#allocation4 + $0xec0] sm:$0xff]
    %v551 = vld [vmem:[#allocation4 + $0xec8] sm:$0xff]
    %v552 = vld [vmem:[#allocation4 + $0xed0] sm:$0xff]
    %v553 = vld [vmem:[#allocation4 + $0xed8] sm:$0xff]
    %v554 = vld [vmem:[#allocation4 + $0xee0] sm:$0xff]
    %v555 = vld [vmem:[#allocation4 + $0xee8] sm:$0xff]
    %v556 = vld [vmem:[#allocation4 + $0xef0] sm:$0xff]
    %v557 = vld [vmem:[#allocation4 + $0xef8] sm:$0xff]
    %v558 = vld [vmem:[#allocation4 + $0xf00] sm:$0xff]
    %v559 = vld [vmem:[#allocation4 + $0xf08] sm:$0xff]
    %v560 = vld [vmem:[#allocation4 + $0xf10] sm:$0xff]
    %v561 = vld [vmem:[#allocation4 + $0xf18] sm:$0xff]
    %v562 = vld [vmem:[#allocation4 + $0xf20] sm:$0xff]
    %v563 = vld [vmem:[#allocation4 + $0xf28] sm:$0xff]
    %v564 = vld [vmem:[#allocation4 + $0xf30] sm:$0xff]
    %v565 = vld [vmem:[#allocation4 + $0xf38] sm:$0xff]
    %v566 = vld [vmem:[#allocation4 + $0xf40] sm:$0xff]
    %v567 = vld [vmem:[#allocation4 + $0xf48] sm:$0xff]
    %v568 = vld [vmem:[#allocation4 + $0xf50] sm:$0xff]
    %v569 = vld [vmem:[#allocation4 + $0xf58] sm:$0xff]
    %v570 = vld [vmem:[#allocation4 + $0xf60] sm:$0xff]
    %v571 = vld [vmem:[#allocation4 + $0xf68] sm:$0xff]
    %v572 = vld [vmem:[#allocation4 + $0xf70] sm:$0xff]
    %v573 = vld [vmem:[#allocation4 + $0xf78] sm:$0xff]
    %v574 = vld [vmem:[#allocation4 + $0xf80] sm:$0xff]
    %v575 = vld [vmem:[#allocation4 + $0xf88] sm:$0xff]
    %v576 = vld [vmem:[#allocation4 + $0xf90] sm:$0xff]
    %v577 = vld [vmem:[#allocation4 + $0xf98] sm:$0xff]
    %v578 = vld [vmem:[#allocation4 + $0xfa0] sm:$0xff]
    %v579 = vld [vmem:[#allocation4 + $0xfa8] sm:$0xff]
    %v580 = vld [vmem:[#allocation4 + $0xfb0] sm:$0xff]
    %v581 = vld [vmem:[#allocation4 + $0xfb8] sm:$0xff]
    %v582 = vld [vmem:[#allocation4 + $0xfc0] sm:$0xff]
    %v583 = vld [vmem:[#allocation4 + $0xfc8] sm:$0xff]
    %v584 = vld [vmem:[#allocation4 + $0xfd0] sm:$0xff]
    %v585 = vld [vmem:[#allocation4 + $0xfd8] sm:$0xff]
    %v586 = vld [vmem:[#allocation4 + $0xfe0] sm:$0xff]
    %v587 = vld [vmem:[#allocation4 + $0xfe8] sm:$0xff]
    %v588 = vld [vmem:[#allocation4 + $0xff0] sm:$0xff]
    %v589 = vld [vmem:[#allocation4 + $0xff8] sm:$0xff]
    %v590 = vpack.c.bf16 %v86, %v78
    %v591 = vpack.c.bf16 %v87, %v79
    %v592 = vpack.c.bf16 %v88, %v80
    %v593 = vpack.c.bf16 %v89, %v81
    %v594 = vpack.c.bf16 %v90, %v82
    %v595 = vpack.c.bf16 %v91, %v83
    %v596 = vpack.c.bf16 %v92, %v84
    %v597 = vpack.c.bf16 %v93, %v85
    %v598 = vpack.c.bf16 %v102, %v94
    %v599 = vpack.c.bf16 %v103, %v95
    %v600 = vpack.c.bf16 %v104, %v96
    %v601 = vpack.c.bf16 %v105, %v97
    %v602 = vpack.c.bf16 %v106, %v98
    %v603 = vpack.c.bf16 %v107, %v99
    %v604 = vpack.c.bf16 %v108, %v100
    %v605 = vpack.c.bf16 %v109, %v101
    %v606 = vpack.c.bf16 %v118, %v110
    %v607 = vpack.c.bf16 %v119, %v111
    %v608 = vpack.c.bf16 %v120, %v112
    %v609 = vpack.c.bf16 %v121, %v113
    %v610 = vpack.c.bf16 %v122, %v114
    %v611 = vpack.c.bf16 %v123, %v115
    %v612 = vpack.c.bf16 %v124, %v116
    %v613 = vpack.c.bf16 %v125, %v117
    %v614 = vpack.c.bf16 %v134, %v126
    %v615 = vpack.c.bf16 %v135, %v127
    %v616 = vpack.c.bf16 %v136, %v128
    %v617 = vpack.c.bf16 %v137, %v129
    %v618 = vpack.c.bf16 %v138, %v130
    %v619 = vpack.c.bf16 %v139, %v131
    %v620 = vpack.c.bf16 %v140, %v132
    %v621 = vpack.c.bf16 %v141, %v133
    %v622 = vpack.c.bf16 %v150, %v142
    %v623 = vpack.c.bf16 %v151, %v143
    %v624 = vpack.c.bf16 %v152, %v144
    %v625 = vpack.c.bf16 %v153, %v145
    %v626 = vpack.c.bf16 %v154, %v146
    %v627 = vpack.c.bf16 %v155, %v147
    %v628 = vpack.c.bf16 %v156, %v148
    %v629 = vpack.c.bf16 %v157, %v149
    %v630 = vpack.c.bf16 %v166, %v158
    %v631 = vpack.c.bf16 %v167, %v159
    %v632 = vpack.c.bf16 %v168, %v160
    %v633 = vpack.c.bf16 %v169, %v161
    %v634 = vpack.c.bf16 %v170, %v162
    %v635 = vpack.c.bf16 %v171, %v163
    %v636 = vpack.c.bf16 %v172, %v164
    %v637 = vpack.c.bf16 %v173, %v165
    %v638 = vpack.c.bf16 %v182, %v174
    %v639 = vpack.c.bf16 %v183, %v175
    %v640 = vpack.c.bf16 %v184, %v176
    %v641 = vpack.c.bf16 %v185, %v177
    %v642 = vpack.c.bf16 %v186, %v178
    %v643 = vpack.c.bf16 %v187, %v179
    %v644 = vpack.c.bf16 %v188, %v180
    %v645 = vpack.c.bf16 %v189, %v181
    %v646 = vpack.c.bf16 %v198, %v190
    %v647 = vpack.c.bf16 %v199, %v191
    %v648 = vpack.c.bf16 %v200, %v192
    %v649 = vpack.c.bf16 %v201, %v193
    %v650 = vpack.c.bf16 %v202, %v194
    %v651 = vpack.c.bf16 %v203, %v195
    %v652 = vpack.c.bf16 %v204, %v196
    %v653 = vpack.c.bf16 %v205, %v197
    %v654 = vpack.c.bf16 %v214, %v206
    %v655 = vpack.c.bf16 %v215, %v207
    %v656 = vpack.c.bf16 %v216, %v208
    %v657 = vpack.c.bf16 %v217, %v209
    %v658 = vpack.c.bf16 %v218, %v210
    %v659 = vpack.c.bf16 %v219, %v211
    %v660 = vpack.c.bf16 %v220, %v212
    %v661 = vpack.c.bf16 %v221, %v213
    %v662 = vpack.c.bf16 %v230, %v222
    %v663 = vpack.c.bf16 %v231, %v223
    %v664 = vpack.c.bf16 %v232, %v224
    %v665 = vpack.c.bf16 %v233, %v225
    %v666 = vpack.c.bf16 %v234, %v226
    %v667 = vpack.c.bf16 %v235, %v227
    %v668 = vpack.c.bf16 %v236, %v228
    %v669 = vpack.c.bf16 %v237, %v229
    %v670 = vpack.c.bf16 %v246, %v238
    %v671 = vpack.c.bf16 %v247, %v239
    %v672 = vpack.c.bf16 %v248, %v240
    %v673 = vpack.c.bf16 %v249, %v241
    %v674 = vpack.c.bf16 %v250, %v242
    %v675 = vpack.c.bf16 %v251, %v243
    %v676 = vpack.c.bf16 %v252, %v244
    %v677 = vpack.c.bf16 %v253, %v245
    %v678 = vpack.c.bf16 %v262, %v254
    %v679 = vpack.c.bf16 %v263, %v255
    %v680 = vpack.c.bf16 %v264, %v256
    %v681 = vpack.c.bf16 %v265, %v257
    %v682 = vpack.c.bf16 %v266, %v258
    %v683 = vpack.c.bf16 %v267, %v259
    %v684 = vpack.c.bf16 %v268, %v260
    %v685 = vpack.c.bf16 %v269, %v261
    %v686 = vpack.c.bf16 %v278, %v270
    %v687 = vpack.c.bf16 %v279, %v271
    %v688 = vpack.c.bf16 %v280, %v272
    %v689 = vpack.c.bf16 %v281, %v273
    %v690 = vpack.c.bf16 %v282, %v274
    %v691 = vpack.c.bf16 %v283, %v275
    %v692 = vpack.c.bf16 %v284, %v276
    %v693 = vpack.c.bf16 %v285, %v277
    %v694 = vpack.c.bf16 %v294, %v286
    %v695 = vpack.c.bf16 %v295, %v287
    %v696 = vpack.c.bf16 %v296, %v288
    %v697 = vpack.c.bf16 %v297, %v289
    %v698 = vpack.c.bf16 %v298, %v290
    %v699 = vpack.c.bf16 %v299, %v291
    %v700 = vpack.c.bf16 %v300, %v292
    %v701 = vpack.c.bf16 %v301, %v293
    %v702 = vpack.c.bf16 %v310, %v302
    %v703 = vpack.c.bf16 %v311, %v303
    %v704 = vpack.c.bf16 %v312, %v304
    %v705 = vpack.c.bf16 %v313, %v305
    %v706 = vpack.c.bf16 %v314, %v306
    %v707 = vpack.c.bf16 %v315, %v307
    %v708 = vpack.c.bf16 %v316, %v308
    %v709 = vpack.c.bf16 %v317, %v309
    %v710 = vpack.c.bf16 %v326, %v318
    %v711 = vpack.c.bf16 %v327, %v319
    %v712 = vpack.c.bf16 %v328, %v320
    %v713 = vpack.c.bf16 %v329, %v321
    %v714 = vpack.c.bf16 %v330, %v322
    %v715 = vpack.c.bf16 %v331, %v323
    %v716 = vpack.c.bf16 %v332, %v324
    %v717 = vpack.c.bf16 %v333, %v325
    %v718 = vpack.c.bf16 %v342, %v334
    %v719 = vpack.c.bf16 %v343, %v335
    %v720 = vpack.c.bf16 %v344, %v336
    %v721 = vpack.c.bf16 %v345, %v337
    %v722 = vpack.c.bf16 %v346, %v338
    %v723 = vpack.c.bf16 %v347, %v339
    %v724 = vpack.c.bf16 %v348, %v340
    %v725 = vpack.c.bf16 %v349, %v341
    %v726 = vpack.c.bf16 %v358, %v350
    %v727 = vpack.c.bf16 %v359, %v351
    %v728 = vpack.c.bf16 %v360, %v352
    %v729 = vpack.c.bf16 %v361, %v353
    %v730 = vpack.c.bf16 %v362, %v354
    %v731 = vpack.c.bf16 %v363, %v355
    %v732 = vpack.c.bf16 %v364, %v356
    %v733 = vpack.c.bf16 %v365, %v357
    %v734 = vpack.c.bf16 %v374, %v366
    %v735 = vpack.c.bf16 %v375, %v367
    %v736 = vpack.c.bf16 %v376, %v368
    %v737 = vpack.c.bf16 %v377, %v369
    %v738 = vpack.c.bf16 %v378, %v370
    %v739 = vpack.c.bf16 %v379, %v371
    %v740 = vpack.c.bf16 %v380, %v372
    %v741 = vpack.c.bf16 %v381, %v373
    %v742 = vpack.c.bf16 %v390, %v382
    %v743 = vpack.c.bf16 %v391, %v383
    %v744 = vpack.c.bf16 %v392, %v384
    %v745 = vpack.c.bf16 %v393, %v385
    %v746 = vpack.c.bf16 %v394, %v386
    %v747 = vpack.c.bf16 %v395, %v387
    %v748 = vpack.c.bf16 %v396, %v388
    %v749 = vpack.c.bf16 %v397, %v389
    %v750 = vpack.c.bf16 %v406, %v398
    %v751 = vpack.c.bf16 %v407, %v399
    %v752 = vpack.c.bf16 %v408, %v400
    %v753 = vpack.c.bf16 %v409, %v401
    %v754 = vpack.c.bf16 %v410, %v402
    %v755 = vpack.c.bf16 %v411, %v403
    %v756 = vpack.c.bf16 %v412, %v404
    %v757 = vpack.c.bf16 %v413, %v405
    %v758 = vpack.c.bf16 %v422, %v414
    %v759 = vpack.c.bf16 %v423, %v415
    %v760 = vpack.c.bf16 %v424, %v416
    %v761 = vpack.c.bf16 %v425, %v417
    %v762 = vpack.c.bf16 %v426, %v418
    %v763 = vpack.c.bf16 %v427, %v419
    %v764 = vpack.c.bf16 %v428, %v420
    %v765 = vpack.c.bf16 %v429, %v421
    %v766 = vpack.c.bf16 %v438, %v430
    %v767 = vpack.c.bf16 %v439, %v431
    %v768 = vpack.c.bf16 %v440, %v432
    %v769 = vpack.c.bf16 %v441, %v433
    %v770 = vpack.c.bf16 %v442, %v434
    %v771 = vpack.c.bf16 %v443, %v435
    %v772 = vpack.c.bf16 %v444, %v436
    %v773 = vpack.c.bf16 %v445, %v437
    %v774 = vpack.c.bf16 %v454, %v446
    %v775 = vpack.c.bf16 %v455, %v447
    %v776 = vpack.c.bf16 %v456, %v448
    %v777 = vpack.c.bf16 %v457, %v449
    %v778 = vpack.c.bf16 %v458, %v450
    %v779 = vpack.c.bf16 %v459, %v451
    %v780 = vpack.c.bf16 %v460, %v452
    %v781 = vpack.c.bf16 %v461, %v453
    %v782 = vpack.c.bf16 %v470, %v462
    %v783 = vpack.c.bf16 %v471, %v463
    %v784 = vpack.c.bf16 %v472, %v464
    %v785 = vpack.c.bf16 %v473, %v465
    %v786 = vpack.c.bf16 %v474, %v466
    %v787 = vpack.c.bf16 %v475, %v467
    %v788 = vpack.c.bf16 %v476, %v468
    %v789 = vpack.c.bf16 %v477, %v469
    %v790 = vpack.c.bf16 %v486, %v478
    %v791 = vpack.c.bf16 %v487, %v479
    %v792 = vpack.c.bf16 %v488, %v480
    %v793 = vpack.c.bf16 %v489, %v481
    %v794 = vpack.c.bf16 %v490, %v482
    %v795 = vpack.c.bf16 %v491, %v483
    %v796 = vpack.c.bf16 %v492, %v484
    %v797 = vpack.c.bf16 %v493, %v485
    %v798 = vpack.c.bf16 %v502, %v494
    %v799 = vpack.c.bf16 %v503, %v495
    %v800 = vpack.c.bf16 %v504, %v496
    %v801 = vpack.c.bf16 %v505, %v497
    %v802 = vpack.c.bf16 %v506, %v498
    %v803 = vpack.c.bf16 %v507, %v499
    %v804 = vpack.c.bf16 %v508, %v500
    %v805 = vpack.c.bf16 %v509, %v501
    %v806 = vpack.c.bf16 %v518, %v510
    %v807 = vpack.c.bf16 %v519, %v511
    %v808 = vpack.c.bf16 %v520, %v512
    %v809 = vpack.c.bf16 %v521, %v513
    %v810 = vpack.c.bf16 %v522, %v514
    %v811 = vpack.c.bf16 %v523, %v515
    %v812 = vpack.c.bf16 %v524, %v516
    %v813 = vpack.c.bf16 %v525, %v517
    %v814 = vpack.c.bf16 %v534, %v526
    %v815 = vpack.c.bf16 %v535, %v527
    %v816 = vpack.c.bf16 %v536, %v528
    %v817 = vpack.c.bf16 %v537, %v529
    %v818 = vpack.c.bf16 %v538, %v530
    %v819 = vpack.c.bf16 %v539, %v531
    %v820 = vpack.c.bf16 %v540, %v532
    %v821 = vpack.c.bf16 %v541, %v533
    %v822 = vpack.c.bf16 %v550, %v542
    %v823 = vpack.c.bf16 %v551, %v543
    %v824 = vpack.c.bf16 %v552, %v544
    %v825 = vpack.c.bf16 %v553, %v545
    %v826 = vpack.c.bf16 %v554, %v546
    %v827 = vpack.c.bf16 %v555, %v547
    %v828 = vpack.c.bf16 %v556, %v548
    %v829 = vpack.c.bf16 %v557, %v549
    %v830 = vpack.c.bf16 %v566, %v558
    %v831 = vpack.c.bf16 %v567, %v559
    %v832 = vpack.c.bf16 %v568, %v560
    %v833 = vpack.c.bf16 %v569, %v561
    %v834 = vpack.c.bf16 %v570, %v562
    %v835 = vpack.c.bf16 %v571, %v563
    %v836 = vpack.c.bf16 %v572, %v564
    %v837 = vpack.c.bf16 %v573, %v565
    %v838 = vpack.c.bf16 %v582, %v574
    %v839 = vpack.c.bf16 %v583, %v575
    %v840 = vpack.c.bf16 %v584, %v576
    %v841 = vpack.c.bf16 %v585, %v577
    %v842 = vpack.c.bf16 %v586, %v578
    %v843 = vpack.c.bf16 %v587, %v579
    %v844 = vpack.c.bf16 %v588, %v580
    %v845 = vpack.c.bf16 %v589, %v581
    %v846 = vld [vmem:[#allocation6] sm:$0xff]
    %v848 = vlaneseq
    %v849 = vshrl.u32 %v848, 7
    %v850 = vsub.s32 0, %v849
    %v851 = vrot.slane %v846, %v850
    %v852 = vlaneseq
    %v853 = vshrl.u32 %v852, 7
    %v854 = vsub.s32 1, %v853
    %v855 = vrot.slane %v846, %v854
    %v856 = vlaneseq
    %v857 = vshrl.u32 %v856, 7
    %v858 = vsub.s32 2, %v857
    %v859 = vrot.slane %v846, %v858
    %v860 = vlaneseq
    %v861 = vshrl.u32 %v860, 7
    %v862 = vsub.s32 3, %v861
    %v863 = vrot.slane %v846, %v862
    %v864 = vlaneseq
    %v865 = vshrl.u32 %v864, 7
    %v866 = vsub.s32 4, %v865
    %v867 = vrot.slane %v846, %v866
    %v868 = vlaneseq
    %v869 = vshrl.u32 %v868, 7
    %v870 = vsub.s32 5, %v869
    %v871 = vrot.slane %v846, %v870
    %v872 = vlaneseq
    %v873 = vshrl.u32 %v872, 7
    %v874 = vsub.s32 6, %v873
    %v875 = vrot.slane %v846, %v874
    %v876 = vlaneseq
    %v877 = vshrl.u32 %v876, 7
    %v878 = vsub.s32 7, %v877
    %v879 = vrot.slane %v846, %v878
    %888 = vmatprep.subr.bf16.mxu0 %v591
    %889 = vmatpush1.bf16.msra.mxu0 %v590
    %890 = vmatprep.subr.bf16.mxu0 %v599
    %891 = vmatpush1.bf16.msra.mxu0 %v598
    %892 = vmatprep.subr.bf16.mxu0 %v607
    %893 = vmatpush1.bf16.msra.mxu0 %v606
    %894 = vmatprep.subr.bf16.mxu0 %v615
    %895 = vmatpush1.bf16.msra.mxu0 %v614
    %896 = vmatprep.subr.bf16.mxu0 %v623
    %897 = vmatpush1.bf16.msra.mxu0 %v622
    %898 = vmatprep.subr.bf16.mxu0 %v631
    %899 = vmatpush1.bf16.msra.mxu0 %v630
    %900 = vmatprep.subr.bf16.mxu0 %v639
    %901 = vmatpush1.bf16.msra.mxu0 %v638
    %902 = vmatprep.subr.bf16.mxu0 %v647
    %903 = vmatpush1.bf16.msra.mxu0 %v646
    %904 = vmatprep.subr.bf16.mxu0 %v655
    %905 = vmatpush1.bf16.msra.mxu0 %v654
    %906 = vmatprep.subr.bf16.mxu0 %v663
    %907 = vmatpush1.bf16.msra.mxu0 %v662
    %908 = vmatprep.subr.bf16.mxu0 %v671
    %909 = vmatpush1.bf16.msra.mxu0 %v670
    %910 = vmatprep.subr.bf16.mxu0 %v679
    %911 = vmatpush1.bf16.msra.mxu0 %v678
    %912 = vmatprep.subr.bf16.mxu0 %v687
    %913 = vmatpush1.bf16.msra.mxu0 %v686
    %914 = vmatprep.subr.bf16.mxu0 %v695
    %915 = vmatpush1.bf16.msra.mxu0 %v694
    %916 = vmatprep.subr.bf16.mxu0 %v703
    %917 = vmatpush1.bf16.msra.mxu0 %v702
    %918 = vmatprep.subr.bf16.mxu0 %v711
    %919 = vmatpush1.bf16.msra.mxu0 %v710
    %920 = vmatprep.mubr.bf16.mxu0 %v75
    %921 = vmatmul.mubr.bf16.gmra.mrb[0].mxu0 %v74
    %v922 = vpop.f32.mrb[0].mxu0
    %v923 = vadd.f32 %v851, %v922
    %v924 = vpop.f32.mrb[0].mxu0
    %v925 = vadd.f32 %v855, %v924
    %v926 = vpop.f32.mrb[0].mxu0
    %v927 = vpop.f32.mrb[0].mxu0
    %928 = vdwg.mxu0
    %929 = vmatprep.subr.bf16.mxu0 %v719
    %930 = vmatpush1.bf16.msra.mxu0 %v718
    %931 = vmatprep.subr.bf16.mxu0 %v727
    %932 = vmatpush1.bf16.msra.mxu0 %v726
    %933 = vmatprep.subr.bf16.mxu0 %v735
    %934 = vmatpush1.bf16.msra.mxu0 %v734
    %935 = vmatprep.subr.bf16.mxu0 %v743
    %936 = vmatpush1.bf16.msra.mxu0 %v742
    %937 = vmatprep.subr.bf16.mxu0 %v751
    %938 = vmatpush1.bf16.msra.mxu0 %v750
    %939 = vmatprep.subr.bf16.mxu0 %v759
    %940 = vmatpush1.bf16.msra.mxu0 %v758
    %941 = vmatprep.subr.bf16.mxu0 %v767
    %942 = vmatpush1.bf16.msra.mxu0 %v766
    %943 = vmatprep.subr.bf16.mxu0 %v775
    %944 = vmatpush1.bf16.msra.mxu0 %v774
    %945 = vmatprep.subr.bf16.mxu0 %v783
    %946 = vmatpush1.bf16.msra.mxu0 %v782
    %947 = vmatprep.subr.bf16.mxu0 %v791
    %948 = vmatpush1.bf16.msra.mxu0 %v790
    %949 = vmatprep.subr.bf16.mxu0 %v799
    %950 = vmatpush1.bf16.msra.mxu0 %v798
    %951 = vmatprep.subr.bf16.mxu0 %v807
    %952 = vmatpush1.bf16.msra.mxu0 %v806
    %953 = vmatprep.subr.bf16.mxu0 %v815
    %954 = vmatpush1.bf16.msra.mxu0 %v814
    %955 = vmatprep.subr.bf16.mxu0 %v823
    %956 = vmatpush1.bf16.msra.mxu0 %v822
    %957 = vmatprep.subr.bf16.mxu0 %v831
    %958 = vmatpush1.bf16.msra.mxu0 %v830
    %959 = vmatprep.subr.bf16.mxu0 %v839
    %960 = vmatpush1.bf16.msra.mxu0 %v838
    %961 = vmatprep.mubr.bf16.mxu0 %v77
    %962 = vmatmul.mubr.bf16.gmra.mrb[0].mxu0 %v76
    %v963 = vpop.f32.mrb[0].mxu0
    %v964 = vadd.f32 %v923, %v963
    %v965 = vpop.f32.mrb[0].mxu0
    %v966 = vadd.f32 %v925, %v965
    %v967 = vpop.f32.mrb[0].mxu0
    %v968 = vpop.f32.mrb[0].mxu0
    %969 = vdwg.mxu0
    %970 = vmatprep.subr.bf16.mxu0 %v593
    %971 = vmatpush1.bf16.msra.mxu0 %v592
    %972 = vmatprep.subr.bf16.mxu0 %v601
    %973 = vmatpush1.bf16.msra.mxu0 %v600
    %974 = vmatprep.subr.bf16.mxu0 %v609
    %975 = vmatpush1.bf16.msra.mxu0 %v608
    %976 = vmatprep.subr.bf16.mxu0 %v617
    %977 = vmatpush1.bf16.msra.mxu0 %v616
    %978 = vmatprep.subr.bf16.mxu0 %v625
    %979 = vmatpush1.bf16.msra.mxu0 %v624
    %980 = vmatprep.subr.bf16.mxu0 %v633
    %981 = vmatpush1.bf16.msra.mxu0 %v632
    %982 = vmatprep.subr.bf16.mxu0 %v641
    %983 = vmatpush1.bf16.msra.mxu0 %v640
    %984 = vmatprep.subr.bf16.mxu0 %v649
    %985 = vmatpush1.bf16.msra.mxu0 %v648
    %986 = vmatprep.subr.bf16.mxu0 %v657
    %987 = vmatpush1.bf16.msra.mxu0 %v656
    %988 = vmatprep.subr.bf16.mxu0 %v665
    %989 = vmatpush1.bf16.msra.mxu0 %v664
    %990 = vmatprep.subr.bf16.mxu0 %v673
    %991 = vmatpush1.bf16.msra.mxu0 %v672
    %992 = vmatprep.subr.bf16.mxu0 %v681
    %993 = vmatpush1.bf16.msra.mxu0 %v680
    %994 = vmatprep.subr.bf16.mxu0 %v689
    %995 = vmatpush1.bf16.msra.mxu0 %v688
    %996 = vmatprep.subr.bf16.mxu0 %v697
    %997 = vmatpush1.bf16.msra.mxu0 %v696
    %998 = vmatprep.subr.bf16.mxu0 %v705
    %999 = vmatpush1.bf16.msra.mxu0 %v704
    %1000 = vmatprep.subr.bf16.mxu0 %v713
    %1001 = vmatpush1.bf16.msra.mxu0 %v712
    %1002 = vmatprep.mubr.bf16.mxu0 %v75
    %1003 = vmatmul.mubr.bf16.gmra.mrb[0].mxu0 %v74
    %v1004 = vpop.f32.mrb[0].mxu0
    %v1005 = vadd.f32 %v859, %v1004
    %v1006 = vpop.f32.mrb[0].mxu0
    %v1007 = vadd.f32 %v863, %v1006
    %v1008 = vpop.f32.mrb[0].mxu0
    %v1009 = vpop.f32.mrb[0].mxu0
    %1010 = vdwg.mxu0
    %1011 = vmatprep.subr.bf16.mxu0 %v721
    %1012 = vmatpush1.bf16.msra.mxu0 %v720
    %1013 = vmatprep.subr.bf16.mxu0 %v729
    %1014 = vmatpush1.bf16.msra.mxu0 %v728
    %1015 = vmatprep.subr.bf16.mxu0 %v737
    %1016 = vmatpush1.bf16.msra.mxu0 %v736
    %1017 = vmatprep.subr.bf16.mxu0 %v745
    %1018 = vmatpush1.bf16.msra.mxu0 %v744
    %1019 = vmatprep.subr.bf16.mxu0 %v753
    %1020 = vmatpush1.bf16.msra.mxu0 %v752
    %1021 = vmatprep.subr.bf16.mxu0 %v761
    %1022 = vmatpush1.bf16.msra.mxu0 %v760
    %1023 = vmatprep.subr.bf16.mxu0 %v769
    %1024 = vmatpush1.bf16.msra.mxu0 %v768
    %1025 = vmatprep.subr.bf16.mxu0 %v777
    %1026 = vmatpush1.bf16.msra.mxu0 %v776
    %1027 = vmatprep.subr.bf16.mxu0 %v785
    %1028 = vmatpush1.bf16.msra.mxu0 %v784
    %1029 = vmatprep.subr.bf16.mxu0 %v793
    %1030 = vmatpush1.bf16.msra.mxu0 %v792
    %1031 = vmatprep.subr.bf16.mxu0 %v801
    %1032 = vmatpush1.bf16.msra.mxu0 %v800
    %1033 = vmatprep.subr.bf16.mxu0 %v809
    %1034 = vmatpush1.bf16.msra.mxu0 %v808
    %1035 = vmatprep.subr.bf16.mxu0 %v817
    %1036 = vmatpush1.bf16.msra.mxu0 %v816
    %1037 = vmatprep.subr.bf16.mxu0 %v825
    %1038 = vmatpush1.bf16.msra.mxu0 %v824
    %1039 = vmatprep.subr.bf16.mxu0 %v833
    %1040 = vmatpush1.bf16.msra.mxu0 %v832
    %1041 = vmatprep.subr.bf16.mxu0 %v841
    %1042 = vmatpush1.bf16.msra.mxu0 %v840
    %1043 = vmatprep.mubr.bf16.mxu0 %v77
    %1044 = vmatmul.mubr.bf16.gmra.mrb[0].mxu0 %v76
    %v1045 = vpop.f32.mrb[0].mxu0
    %v1046 = vadd.f32 %v1005, %v1045
    %v1047 = vpop.f32.mrb[0].mxu0
    %v1048 = vadd.f32 %v1007, %v1047
    %v1049 = vpop.f32.mrb[0].mxu0
    %v1050 = vpop.f32.mrb[0].mxu0
    %1051 = vdwg.mxu0
    %1052 = vmatprep.subr.bf16.mxu0 %v595
    %1053 = vmatpush1.bf16.msra.mxu0 %v594
    %1054 = vmatprep.subr.bf16.mxu0 %v603
    %1055 = vmatpush1.bf16.msra.mxu0 %v602
    %1056 = vmatprep.subr.bf16.mxu0 %v611
    %1057 = vmatpush1.bf16.msra.mxu0 %v610
    %1058 = vmatprep.subr.bf16.mxu0 %v619
    %1059 = vmatpush1.bf16.msra.mxu0 %v618
    %1060 = vmatprep.subr.bf16.mxu0 %v627
    %1061 = vmatpush1.bf16.msra.mxu0 %v626
    %1062 = vmatprep.subr.bf16.mxu0 %v635
    %1063 = vmatpush1.bf16.msra.mxu0 %v634
    %1064 = vmatprep.subr.bf16.mxu0 %v643
    %1065 = vmatpush1.bf16.msra.mxu0 %v642
    %1066 = vmatprep.subr.bf16.mxu0 %v651
    %1067 = vmatpush1.bf16.msra.mxu0 %v650
    %1068 = vmatprep.subr.bf16.mxu0 %v659
    %1069 = vmatpush1.bf16.msra.mxu0 %v658
    %1070 = vmatprep.subr.bf16.mxu0 %v667
    %1071 = vmatpush1.bf16.msra.mxu0 %v666
    %1072 = vmatprep.subr.bf16.mxu0 %v675
    %1073 = vmatpush1.bf16.msra.mxu0 %v674
    %1074 = vmatprep.subr.bf16.mxu0 %v683
    %1075 = vmatpush1.bf16.msra.mxu0 %v682
    %1076 = vmatprep.subr.bf16.mxu0 %v691
    %1077 = vmatpush1.bf16.msra.mxu0 %v690
    %1078 = vmatprep.subr.bf16.mxu0 %v699
    %1079 = vmatpush1.bf16.msra.mxu0 %v698
    %1080 = vmatprep.subr.bf16.mxu0 %v707
    %1081 = vmatpush1.bf16.msra.mxu0 %v706
    %1082 = vmatprep.subr.bf16.mxu0 %v715
    %1083 = vmatpush1.bf16.msra.mxu0 %v714
    %1084 = vmatprep.mubr.bf16.mxu0 %v75
    %1085 = vmatmul.mubr.bf16.gmra.mrb[0].mxu0 %v74
    %v1086 = vpop.f32.mrb[0].mxu0
    %v1087 = vadd.f32 %v867, %v1086
    %v1088 = vpop.f32.mrb[0].mxu0
    %v1089 = vadd.f32 %v871, %v1088
    %v1090 = vpop.f32.mrb[0].mxu0
    %v1091 = vpop.f32.mrb[0].mxu0
    %1092 = vdwg.mxu0
    %1093 = vmatprep.subr.bf16.mxu0 %v723
    %1094 = vmatpush1.bf16.msra.mxu0 %v722
    %1095 = vmatprep.subr.bf16.mxu0 %v731
    %1096 = vmatpush1.bf16.msra.mxu0 %v730
    %1097 = vmatprep.subr.bf16.mxu0 %v739
    %1098 = vmatpush1.bf16.msra.mxu0 %v738
    %1099 = vmatprep.subr.bf16.mxu0 %v747
    %1100 = vmatpush1.bf16.msra.mxu0 %v746
    %1101 = vmatprep.subr.bf16.mxu0 %v755
    %1102 = vmatpush1.bf16.msra.mxu0 %v754
    %1103 = vmatprep.subr.bf16.mxu0 %v763
    %1104 = vmatpush1.bf16.msra.mxu0 %v762
    %1105 = vmatprep.subr.bf16.mxu0 %v771
    %1106 = vmatpush1.bf16.msra.mxu0 %v770
    %1107 = vmatprep.subr.bf16.mxu0 %v779
    %1108 = vmatpush1.bf16.msra.mxu0 %v778
    %1109 = vmatprep.subr.bf16.mxu0 %v787
    %1110 = vmatpush1.bf16.msra.mxu0 %v786
    %1111 = vmatprep.subr.bf16.mxu0 %v795
    %1112 = vmatpush1.bf16.msra.mxu0 %v794
    %1113 = vmatprep.subr.bf16.mxu0 %v803
    %1114 = vmatpush1.bf16.msra.mxu0 %v802
    %1115 = vmatprep.subr.bf16.mxu0 %v811
    %1116 = vmatpush1.bf16.msra.mxu0 %v810
    %1117 = vmatprep.subr.bf16.mxu0 %v819
    %1118 = vmatpush1.bf16.msra.mxu0 %v818
    %1119 = vmatprep.subr.bf16.mxu0 %v827
    %1120 = vmatpush1.bf16.msra.mxu0 %v826
    %1121 = vmatprep.subr.bf16.mxu0 %v835
    %1122 = vmatpush1.bf16.msra.mxu0 %v834
    %1123 = vmatprep.subr.bf16.mxu0 %v843
    %1124 = vmatpush1.bf16.msra.mxu0 %v842
    %1125 = vmatprep.mubr.bf16.mxu0 %v77
    %1126 = vmatmul.mubr.bf16.gmra.mrb[0].mxu0 %v76
    %v1127 = vpop.f32.mrb[0].mxu0
    %v1128 = vadd.f32 %v1087, %v1127
    %v1129 = vpop.f32.mrb[0].mxu0
    %v1130 = vadd.f32 %v1089, %v1129
    %v1131 = vpop.f32.mrb[0].mxu0
    %v1132 = vpop.f32.mrb[0].mxu0
    %1133 = vdwg.mxu0
    %1134 = vmatprep.subr.bf16.mxu0 %v597
    %1135 = vmatpush1.bf16.msra.mxu0 %v596
    %1136 = vmatprep.subr.bf16.mxu0 %v605
    %1137 = vmatpush1.bf16.msra.mxu0 %v604
    %1138 = vmatprep.subr.bf16.mxu0 %v613
    %1139 = vmatpush1.bf16.msra.mxu0 %v612
    %1140 = vmatprep.subr.bf16.mxu0 %v621
    %1141 = vmatpush1.bf16.msra.mxu0 %v620
    %1142 = vmatprep.subr.bf16.mxu0 %v629
    %1143 = vmatpush1.bf16.msra.mxu0 %v628
    %1144 = vmatprep.subr.bf16.mxu0 %v637
    %1145 = vmatpush1.bf16.msra.mxu0 %v636
    %1146 = vmatprep.subr.bf16.mxu0 %v645
    %1147 = vmatpush1.bf16.msra.mxu0 %v644
    %1148 = vmatprep.subr.bf16.mxu0 %v653
    %1149 = vmatpush1.bf16.msra.mxu0 %v652
    %1150 = vmatprep.subr.bf16.mxu0 %v661
    %1151 = vmatpush1.bf16.msra.mxu0 %v660
    %1152 = vmatprep.subr.bf16.mxu0 %v669
    %1153 = vmatpush1.bf16.msra.mxu0 %v668
    %1154 = vmatprep.subr.bf16.mxu0 %v677
    %1155 = vmatpush1.bf16.msra.mxu0 %v676
    %1156 = vmatprep.subr.bf16.mxu0 %v685
    %1157 = vmatpush1.bf16.msra.mxu0 %v684
    %1158 = vmatprep.subr.bf16.mxu0 %v693
    %1159 = vmatpush1.bf16.msra.mxu0 %v692
    %1160 = vmatprep.subr.bf16.mxu0 %v701
    %1161 = vmatpush1.bf16.msra.mxu0 %v700
    %1162 = vmatprep.subr.bf16.mxu0 %v709
    %1163 = vmatpush1.bf16.msra.mxu0 %v708
    %1164 = vmatprep.subr.bf16.mxu0 %v717
    %1165 = vmatpush1.bf16.msra.mxu0 %v716
    %1166 = vmatprep.mubr.bf16.mxu0 %v75
    %1167 = vmatmul.mubr.bf16.gmra.mrb[0].mxu0 %v74
    %v1168 = vpop.f32.mrb[0].mxu0
    %v1169 = vadd.f32 %v875, %v1168
    %v1170 = vpop.f32.mrb[0].mxu0
    %v1171 = vadd.f32 %v879, %v1170
    %v1172 = vpop.f32.mrb[0].mxu0
    %v1173 = vpop.f32.mrb[0].mxu0
    %1174 = vdwg.mxu0
    %1175 = vmatprep.subr.bf16.mxu0 %v725
    %1176 = vmatpush1.bf16.msra.mxu0 %v724
    %1177 = vmatprep.subr.bf16.mxu0 %v733
    %1178 = vmatpush1.bf16.msra.mxu0 %v732
    %1179 = vmatprep.subr.bf16.mxu0 %v741
    %1180 = vmatpush1.bf16.msra.mxu0 %v740
    %1181 = vmatprep.subr.bf16.mxu0 %v749
    %1182 = vmatpush1.bf16.msra.mxu0 %v748
    %1183 = vmatprep.subr.bf16.mxu0 %v757
    %1184 = vmatpush1.bf16.msra.mxu0 %v756
    %1185 = vmatprep.subr.bf16.mxu0 %v765
    %1186 = vmatpush1.bf16.msra.mxu0 %v764
    %1187 = vmatprep.subr.bf16.mxu0 %v773
    %1188 = vmatpush1.bf16.msra.mxu0 %v772
    %1189 = vmatprep.subr.bf16.mxu0 %v781
    %1190 = vmatpush1.bf16.msra.mxu0 %v780
    %1191 = vmatprep.subr.bf16.mxu0 %v789
    %1192 = vmatpush1.bf16.msra.mxu0 %v788
    %1193 = vmatprep.subr.bf16.mxu0 %v797
    %1194 = vmatpush1.bf16.msra.mxu0 %v796
    %1195 = vmatprep.subr.bf16.mxu0 %v805
    %1196 = vmatpush1.bf16.msra.mxu0 %v804
    %1197 = vmatprep.subr.bf16.mxu0 %v813
    %1198 = vmatpush1.bf16.msra.mxu0 %v812
    %1199 = vmatprep.subr.bf16.mxu0 %v821
    %1200 = vmatpush1.bf16.msra.mxu0 %v820
    %1201 = vmatprep.subr.bf16.mxu0 %v829
    %1202 = vmatpush1.bf16.msra.mxu0 %v828
    %1203 = vmatprep.subr.bf16.mxu0 %v837
    %1204 = vmatpush1.bf16.msra.mxu0 %v836
    %1205 = vmatprep.subr.bf16.mxu0 %v845
    %1206 = vmatpush1.bf16.msra.mxu0 %v844
    %1207 = vmatprep.mubr.bf16.mxu0 %v77
    %1208 = vmatmul.mubr.bf16.gmra.mrb[0].mxu0 %v76
    %v1209 = vpop.f32.mrb[0].mxu0
    %v1210 = vadd.f32 %v1169, %v1209
    %v1211 = vpop.f32.mrb[0].mxu0
    %v1212 = vadd.f32 %v1171, %v1211
    %v1213 = vpop.f32.mrb[0].mxu0
    %v1214 = vpop.f32.mrb[0].mxu0
    %1215 = vdwg.mxu0
    %vm1216 = vcmp.ge.f32.partialorder %v964, 0.0
    %vm1217 = vcmp.ge.f32.partialorder %v966, 0.0
    %vm1218 = vcmp.ge.f32.partialorder %v1046, 0.0
    %vm1219 = vcmp.ge.f32.partialorder %v1048, 0.0
    %vm1220 = vcmp.ge.f32.partialorder %v1128, 0.0
    %vm1221 = vcmp.ge.f32.partialorder %v1130, 0.0
    %vm1222 = vcmp.ge.f32.partialorder %v1210, 0.0
    %vm1223 = vcmp.ge.f32.partialorder %v1212, 0.0
    %v1224 = vmul.f32 %v964, 0.2
    %v1225 = vmul.f32 %v966, 0.2
    %v1226 = vmul.f32 %v1046, 0.2
    %v1227 = vmul.f32 %v1048, 0.2
    %v1228 = vmul.f32 %v1128, 0.2
    %v1229 = vmul.f32 %v1130, 0.2
    %v1230 = vmul.f32 %v1210, 0.2
    %v1231 = vmul.f32 %v1212, 0.2
    %v1232 = vsel %vm1216, %v964, %v1224
    %v1233 = vsel %vm1217, %v966, %v1225
    %v1234 = vsel %vm1218, %v1046, %v1226
    %v1235 = vsel %vm1219, %v1048, %v1227
    %v1236 = vsel %vm1220, %v1128, %v1228
    %v1237 = vsel %vm1221, %v1130, %v1229
    %v1238 = vsel %vm1222, %v1210, %v1230
    %v1239 = vsel %vm1223, %v1212, %v1231
    %v1240 = vpack.c.bf16 %v1232, %v1232
    %v1241 = vpack.c.bf16 %v1233, %v1233
    %v1242 = vpack.c.bf16 %v1234, %v1234
    %v1243 = vpack.c.bf16 %v1235, %v1235
    %v1244 = vpack.c.bf16 %v1236, %v1236
    %v1245 = vpack.c.bf16 %v1237, %v1237
    %v1246 = vpack.c.bf16 %v1238, %v1238
    %v1247 = vpack.c.bf16 %v1239, %v1239
    %v1256 = vcombine.low %v1240, %v1241
    %v1257 = vcombine.low %v1242, %v1243
    %v1258 = vcombine.low %v1244, %v1245
    %v1259 = vcombine.low %v1246, %v1247
    %v1261 = vunpack.c.l.s4 1966171168
    %v1262 = vunpack.c.0.s8 %v1261
    %v1263 = vlaneseq
    %v1264 = vshrl.u32 %v1263, 7
    %v1265 = vsub.s32 %v1262, %v1264
    %v1266 = vrot.slane %v1256, %v1265
    %v1268 = vunpack.c.l.s4 1966171168
    %v1269 = vunpack.c.0.s8 %v1268
    %v1270 = vlaneseq
    %v1271 = vshrl.u32 %v1270, 7
    %v1272 = vsub.s32 %v1269, %v1271
    %v1273 = vrot.slane %v1257, %v1272
    %v1275 = vunpack.c.l.s4 1966171168
    %v1276 = vunpack.c.0.s8 %v1275
    %v1277 = vlaneseq
    %v1278 = vshrl.u32 %v1277, 7
    %v1279 = vsub.s32 %v1276, %v1278
    %v1280 = vrot.slane %v1258, %v1279
    %v1282 = vunpack.c.l.s4 1966171168
    %v1283 = vunpack.c.0.s8 %v1282
    %v1284 = vlaneseq
    %v1285 = vshrl.u32 %v1284, 7
    %v1286 = vsub.s32 %v1283, %v1285
    %v1287 = vrot.slane %v1259, %v1286
    %v1288 = vcombine.low %v1266, %v1273
    %v1289 = vcombine.low %v1280, %v1287
    %v1291 = vunpack.c.l.s4 1966171168
    %v1292 = vunpack.c.0.s8 %v1291
    %v1293 = vlaneseq
    %v1294 = vshrl.u32 %v1293, 7
    %v1295 = vsub.s32 %v1292, %v1294
    %v1296 = vrot.slane %v1288, %v1295
    %v1298 = vunpack.c.l.s4 1966171168
    %v1299 = vunpack.c.0.s8 %v1298
    %v1300 = vlaneseq
    %v1301 = vshrl.u32 %v1300, 7
    %v1302 = vsub.s32 %v1299, %v1301
    %v1303 = vrot.slane %v1289, %v1302
    %v1304 = vcombine.low %v1296, %v1303
    %1306 = vst [vmem:[%s3] sm:$0xff] %v1304
    // Predicated region
    $region26: #{fc_layer.1} parent=1 // pred_check
      _
    $region27: #{fc_layer.1} parent=1 // pred_check_branch
      %1308 = sbr.rel (0) target = $region29
    $region28: #{fc_layer.1} parent=1 // pred_region
      _
    $region29: #{fc_layer.1} parent=1 // pred_fallthru
      _
    // Predicated region
    $region30: #{fc_layer.1} parent=1 // pred_check
      _
    $region31: #{fc_layer.1} parent=1 // pred_check_branch
      %1310 = sbr.rel (0) target = $region33
    $region32: #{fc_layer.1} parent=1 // pred_region
      _
    $region33: #{fc_layer.1} parent=1 // pred_fallthru
      _
    %1311 = vsyncpa [#allocation3], 1
    %1312 = vsyncpa [#allocation5], 1

</llo_original>
